<compile_context>
chip_gen: v5e
topology: v5e:2x2
jax: 0.10.0
libtpu: 0.0.40
codegen_flags: <defaults>
</compile_context>

<pallas_src>
from functools import partial

import jax
import jax.numpy as jnp
from jax import lax
from jax.experimental import pallas as pl
from jax.experimental.pallas import tpu as pltpu


def _round_up(n, m):
    return ((n + m - 1) // m) * m


def gru_fc_kernel(x_ref, h0_ref, wih_ref, whh_ref, bi_ref, bhn_ref,
                  wfc_ref, bfc_ref, out_ref, hout_ref, gi_ref):
    """Whole GRU + fc head in one invocation.

    PyTorch nn.GRU gate order (r, z, n):
      r  = sigmoid(x W_ir^T + b_ir + h W_hr^T + b_hr)
      z  = sigmoid(x W_iz^T + b_iz + h W_hz^T + b_hz)
      n  = tanh  (x W_in^T + b_in + r * (h W_hn^T + b_hn))
      h' = (1 - z) * n + z * h
    then out = fc3(relu(h_T)).

    Shapes (padded, lane-aligned; Hp/Op multiples of 128):
      x_ref   : (T*B, D_in)  bf16, time-major flattened
      h0_ref  : (B, Hp)      f32
      wih_ref : (D_in, 3*Hp) bf16, W_ih^T gate-padded columns
      whh_ref : (Hp, 3*Hp)   bf16, W_hh^T gate-padded
      bi_ref  : (1, 3*Hp)    f32, [b_ir+b_hr, b_iz+b_hz, b_in] (r/z folded)
      bhn_ref : (1, Hp)      f32, b_hn
      wfc_ref : (Hp, Op)     bf16, W_fc3^T padded
      bfc_ref : (1, Op)      f32
      out_ref : (B, Op)      f32 padded fc3 output
      hout_ref: (B, Hp)      f32 padded final hidden state
      gi_ref  : VMEM scratch (T*B, 3*Hp) f32, precomputed input projections
    """
    B, Hp = h0_ref.shape
    TB = x_ref.shape[0]
    T = TB // B

    # One MXU call: input projections (+ folded input-side biases) for every
    # timestep at once, staged in f32 VMEM scratch.
    gi_ref[...] = (jnp.dot(x_ref[...], wih_ref[...],
                           preferred_element_type=jnp.float32)
                   + bi_ref[...])

    b_hn = bhn_ref[...]            # (1, Hp) f32 — tiny, safe to hold in vregs

    def step(t, h_prev):
        row0 = pl.multiple_of(t * B, B)
        gi_t = gi_ref[pl.ds(row0, B), :]                    # (B, 3Hp) f32
        # h-dependent matmul on the serial critical path: bf16 operands, f32
        # accumulate; whh_ref read in-place (no hoisted 48-vreg value).
        gh = jnp.dot(h_prev.astype(jnp.bfloat16), whh_ref[...],
                     preferred_element_type=jnp.float32)
        # Lane-aligned gate slices (Hp multiple of 128) -> free views.
        i_r, i_z, i_n = gi_t[:, :Hp], gi_t[:, Hp:2 * Hp], gi_t[:, 2 * Hp:]
        h_r, h_z, h_n = gh[:, :Hp], gh[:, Hp:2 * Hp], gh[:, 2 * Hp:]
        # Gate elementwise math stays f32 (EUP/VPU).
        r = jax.nn.sigmoid(i_r + h_r)
        z = jax.nn.sigmoid(i_z + h_z)
        n = jnp.tanh(i_n + r * (h_n + b_hn))
        return (1.0 - z) * n + z * h_prev

    # Unrolled serial recurrence (T is small and static).
    h_final = lax.fori_loop(0, T, step, h0_ref[...], unroll=True)

    hout_ref[...] = h_final.astype(hout_ref.dtype)
    relu_h = jnp.maximum(h_final, 0.0)
    out_ref[...] = (jnp.dot(relu_h.astype(jnp.bfloat16), wfc_ref[...],
                            preferred_element_type=jnp.float32)
                    + bfc_ref[...]).astype(out_ref.dtype)


def prepare_padded_params(params, input_dim, hidden_dim, output_dim):
    """One-time (outside the per-call path) padding / packing of weights.

    Padded lanes are exactly zero so the h-state padded lanes stay zero across
    the recurrence (n=0, z=0.5 there, h0 pad = 0) and wfc padded rows are zero.
    """
    H = hidden_dim
    Hp = _round_up(max(H, 128), 128)          # 32  -> 128 (lane-aligned gates)
    Op = _round_up(max(output_dim, 128), 128)  # 168 -> 256 (lane-dense store)

    w_ih, w_hh = params["w_ih"], params["w_hh"]       # (3H, D_in), (3H, H)
    b_ih, b_hh = params["b_ih"], params["b_hh"]       # (3H,), (3H,)
    w_fc3, b_fc3 = params["w_fc3"], params["b_fc3"]   # (out_dim, H), (out_dim,)

    def pad_gate_cols(w_t):
        # w_t: (rows, 3H) -> (rows, 3*Hp); gate g's H cols land at offset g*Hp.
        rows = w_t.shape[0]
        out = jnp.zeros((rows, 3 * Hp), dtype=jnp.float32)
        for g in range(3):
            out = out.at[:, g * Hp:g * Hp + H].set(w_t[:, g * H:(g + 1) * H])
        return out

    wih_p = pad_gate_cols(w_ih.T).astype(jnp.bfloat16)               # (D_in, 3Hp)
    whh_p = jnp.zeros((Hp, 3 * Hp), jnp.float32)
    whh_p = whh_p.at[:H, :].set(pad_gate_cols(w_hh.T)).astype(jnp.bfloat16)

    # Fold r/z biases (b_i* + b_h*) into the precomputed input projection;
    # b_hn must stay inside r * (...) per GRU semantics.
    bias_rzn = jnp.concatenate([b_ih[:2 * H] + b_hh[:2 * H], b_ih[2 * H:]])
    bi_p = pad_gate_cols(bias_rzn[None, :])                           # (1, 3Hp) f32
    bhn_p = jnp.zeros((1, Hp), jnp.float32).at[0, :H].set(b_hh[2 * H:])

    wfc_p = (jnp.zeros((Hp, Op), jnp.float32)
             .at[:H, :output_dim].set(w_fc3.T)).astype(jnp.bfloat16)
    bfc_p = jnp.zeros((1, Op), jnp.float32).at[0, :output_dim].set(b_fc3)

    padded = {"wih": wih_p, "whh": whh_p, "bi": bi_p, "bhn": bhn_p,
              "wfc": wfc_p, "bfc": bfc_p}
    return jax.tree_util.tree_map(jax.block_until_ready, padded)


@partial(jax.jit, static_argnames=("out_dim",))
def grunet_forward(x_btd, h0_lbh, padded, *, out_dim):
    """x_btd: (B, T, D_in) f32; h0_lbh: (n_layers=1, B, H) f32; padded: dict."""
    B, T, D_in = x_btd.shape
    H = h0_lbh.shape[-1]
    Hp = padded["whh"].shape[0]
    Op = padded["wfc"].shape[1]

    # Time-major, flattened so the input projection for all steps is one matmul;
    # bf16 operand for the MXU.
    x_flat = jnp.transpose(x_btd, (1, 0, 2)).reshape(T * B, D_in)
    x_flat = x_flat.astype(jnp.bfloat16)

    h0_p = jnp.zeros((B, Hp), jnp.float32).at[:, :H].set(h0_lbh[0])

    # VMEM scaling guard (static shapes -> checked at trace time).
    resident_bytes = (
        x_flat.size * 2 + h0_p.size * 4
        + padded["wih"].size * 2 + padded["whh"].size * 2 + padded["wfc"].size * 2
        + padded["bi"].size * 4 + padded["bhn"].size * 4 + padded["bfc"].size * 4
        + (T * B) * (3 * Hp) * 4          # gi scratch
        + B * Op * 4 + B * Hp * 4)        # outputs
    assert resident_bytes < 16 * 1024 * 1024, (
        "fully-resident GRU kernel would exceed the VMEM budget; chunk the "
        "gi/x staging over time blocks")

    vmem_spec = lambda: pl.BlockSpec(memory_space=pltpu.MemorySpace.VMEM)

    out_p, h_p = pl.pallas_call(
        gru_fc_kernel,
        out_shape=(
            jax.ShapeDtypeStruct((B, Op), jnp.float32),
            jax.ShapeDtypeStruct((B, Hp), jnp.float32),
        ),
        in_specs=[vmem_spec() for _ in range(8)],
        out_specs=(vmem_spec(), vmem_spec()),
        scratch_shapes=[pltpu.VMEM((T * B, 3 * Hp), jnp.float32)],
        compiler_params=pltpu.CompilerParams(
            vmem_limit_bytes=32 * 1024 * 1024,
        ),
    )(x_flat, h0_p, padded["wih"], padded["whh"], padded["bi"],
      padded["bhn"], padded["wfc"], padded["bfc"])

    # Strip padding; match nn.GRU hidden shape (n_layers, B, H).
    return out_p[:, :out_dim], h_p[None, :, :H]


def grunet_reference(x_btd, h0_lbh, params):
    """Pure-JAX f32 reference implementing the same PyTorch semantics."""
    B, T, D_in = x_btd.shape
    H = h0_lbh.shape[-1]
    h = h0_lbh[0]
    w_ih, w_hh = params["w_ih"], params["w_hh"]
    b_ih, b_hh = params["b_ih"], params["b_hh"]
    for t in range(T):
        x_t = x_btd[:, t, :]
        gi = x_t @ w_ih.T + b_ih
        gh = h @ w_hh.T + b_hh
        i_r, i_z, i_n = gi[:, :H], gi[:, H:2 * H], gi[:, 2 * H:]
        h_r, h_z, h_n = gh[:, :H], gh[:, H:2 * H], gh[:, 2 * H:]
        r = jax.nn.sigmoid(i_r + h_r)
        z = jax.nn.sigmoid(i_z + h_z)
        n = jnp.tanh(i_n + r * h_n)
        h = (1.0 - z) * n + z * h
    out = jnp.maximum(h, 0.0) @ params["w_fc3"].T + params["b_fc3"]
    return out, h[None, :, :]


def init_params(key, input_dim, hidden_dim, output_dim):
    """Deterministic init mirroring PyTorch shapes; gate order (r, z, n)."""
    k = jax.random.split(key, 6)
    s = 1.0 / jnp.sqrt(hidden_dim)
    u = lambda kk, shape: jax.random.uniform(kk, shape, jnp.float32, -s, s)
    return {
        "w_ih": u(k[0], (3 * hidden_dim, input_dim)),
        "w_hh": u(k[1], (3 * hidden_dim, hidden_dim)),
        "b_ih": u(k[2], (3 * hidden_dim,)),
        "b_hh": u(k[3], (3 * hidden_dim,)),
        "w_fc3": u(k[4], (output_dim, hidden_dim)),
        "b_fc3": u(k[5], (output_dim,)),
    }
    # TODO(synk): fc1/fc2/gru2/gru3/dropout are unused by forward(); omitted.


if __name__ == "__main__":
    B, T, D_in = 8, 8, 16
    hidden_dim = 2 ** 5      # 32, as in the module
    output_dim = 168
    n_layers = 1

    key = jax.random.PRNGKey(0)
    kx, kp = jax.random.split(key)
    x = jax.random.normal(kx, (B, T, D_in), dtype=jnp.float32)
    h0 = jnp.zeros((n_layers, B, hidden_dim), dtype=jnp.float32)  # init_hidden()
    params = init_params(kp, D_in, hidden_dim, output_dim)

    # One-time padding/packing, hoisted out of the per-call path.
    padded = prepare_padded_params(params, D_in, hidden_dim, output_dim)

    out, h = grunet_forward(x, h0, padded, out_dim=output_dim)
    jax.block_until_ready((out, h))

    out_ref, h_ref = grunet_reference(x, h0, params)
    assert out.shape == (B, output_dim) and h.shape == (n_layers, B, hidden_dim)
    # bf16 MXU operands => relaxed tolerance vs. the f32 reference.
    assert jnp.allclose(out, out_ref, atol=5e-2, rtol=5e-2), (
        float(jnp.max(jnp.abs(out - out_ref))))
    assert jnp.allclose(h, h_ref, atol=5e-2, rtol=5e-2), (
        float(jnp.max(jnp.abs(h - h_ref))))

    print("KERNEL_OK")
</pallas_src>

<mosaic_0001>
module attributes {stable_mosaic.version = 11 : i64} {
  func.func @gru_fc_kernel(%arg0: memref<64x16xbf16, #tpu.memory_space<vmem>>, %arg1: memref<8x128xf32, #tpu.memory_space<vmem>>, %arg2: memref<16x384xbf16, #tpu.memory_space<vmem>>, %arg3: memref<128x384xbf16, #tpu.memory_space<vmem>>, %arg4: memref<1x384xf32, #tpu.memory_space<vmem>>, %arg5: memref<1x128xf32, #tpu.memory_space<vmem>>, %arg6: memref<128x256xbf16, #tpu.memory_space<vmem>>, %arg7: memref<1x256xf32, #tpu.memory_space<vmem>>, %arg8: memref<8x256xf32, #tpu.memory_space<vmem>>, %arg9: memref<8x128xf32, #tpu.memory_space<vmem>>, %arg10: memref<64x384xf32, #tpu.memory_space<vmem>>) attributes {dimension_semantics = [], scalar_prefetch = 0 : i64, scratch_operands = 1 : i64, tpu.core_type = #tpu.core_type<tc>} {
    %c0 = arith.constant 0 : index
    %c0_0 = arith.constant 0 : index
    %0 = vector.load %arg0[%c0, %c0_0] : memref<64x16xbf16, #tpu.memory_space<vmem>>, vector<64x16xbf16>
    %c0_1 = arith.constant 0 : index
    %c0_2 = arith.constant 0 : index
    %1 = vector.load %arg2[%c0_1, %c0_2] : memref<16x384xbf16, #tpu.memory_space<vmem>>, vector<16x384xbf16>
    %cst = arith.constant dense<0.000000e+00> : vector<64x384xf32>
    %2 = tpu.matmul %0, %1, %cst {dimension_numbers = #tpu.dot_dimension_numbers<[1], [0], [0], [1], [0, 0, 1, 1], [], []>} : vector<64x16xbf16>, vector<16x384xbf16>, vector<64x384xf32> -> vector<64x384xf32>
    %c0_3 = arith.constant 0 : index
    %c0_4 = arith.constant 0 : index
    %3 = vector.load %arg4[%c0_3, %c0_4] : memref<1x384xf32, #tpu.memory_space<vmem>>, vector<1x384xf32>
    %4 = vector.broadcast %3 : vector<1x384xf32> to vector<64x384xf32>
    %5 = arith.addf %2, %4 : vector<64x384xf32>
    %c0_5 = arith.constant 0 : index
    %c0_6 = arith.constant 0 : index
    %6 = vector.load %arg10[%c0_5, %c0_6] : memref<64x384xf32, #tpu.memory_space<vmem>>, vector<64x384xf32>
    tpu.vector_store %arg10[%c0_5, %c0_6], %5 {strides = array<i32>} : memref<64x384xf32, #tpu.memory_space<vmem>>, vector<64x384xf32>,
    %c0_7 = arith.constant 0 : index
    %c0_8 = arith.constant 0 : index
    %7 = vector.load %arg5[%c0_7, %c0_8] : memref<1x128xf32, #tpu.memory_space<vmem>>, vector<1x128xf32>
    %c0_9 = arith.constant 0 : index
    %c0_10 = arith.constant 0 : index
    %8 = vector.load %arg1[%c0_9, %c0_10] : memref<8x128xf32, #tpu.memory_space<vmem>>, vector<8x128xf32>
    %c0_i32 = arith.constant 0 : i32
    %c8_i32 = arith.constant 8 : i32
    %9 = arith.muli %c0_i32, %c8_i32 : i32
    %10 = tpu.assume_multiple %9, 8 : i32
    %11 = arith.index_cast %10 : i32 to index
    %c0_11 = arith.constant 0 : index
    %12 = vector.load %arg10[%11, %c0_11] : memref<64x384xf32, #tpu.memory_space<vmem>>, vector<8x384xf32>
    %13 = arith.truncf %8 : vector<8x128xf32> to vector<8x128xbf16>
    %c0_12 = arith.constant 0 : index
    %c0_13 = arith.constant 0 : index
    %14 = vector.load %arg3[%c0_12, %c0_13] : memref<128x384xbf16, #tpu.memory_space<vmem>>, vector<128x384xbf16>
    %cst_14 = arith.constant dense<0.000000e+00> : vector<8x384xf32>
    %15 = tpu.matmul %13, %14, %cst_14 {dimension_numbers = #tpu.dot_dimension_numbers<[1], [0], [0], [1], [0, 0, 1, 1], [], []>} : vector<8x128xbf16>, vector<128x384xbf16>, vector<8x384xf32> -> vector<8x384xf32>
    %16 = vector.extract_strided_slice %12 {offsets = [0, 0], sizes = [8, 128], strides = [1, 1]} : vector<8x384xf32> to vector<8x128xf32>
    %17 = vector.extract_strided_slice %12 {offsets = [0, 128], sizes = [8, 128], strides = [1, 1]} : vector<8x384xf32> to vector<8x128xf32>
    %18 = vector.extract_strided_slice %12 {offsets = [0, 256], sizes = [8, 128], strides = [1, 1]} : vector<8x384xf32> to vector<8x128xf32>
    %19 = vector.extract_strided_slice %15 {offsets = [0, 0], sizes = [8, 128], strides = [1, 1]} : vector<8x384xf32> to vector<8x128xf32>
    %20 = vector.extract_strided_slice %15 {offsets = [0, 128], sizes = [8, 128], strides = [1, 1]} : vector<8x384xf32> to vector<8x128xf32>
    %21 = vector.extract_strided_slice %15 {offsets = [0, 256], sizes = [8, 128], strides = [1, 1]} : vector<8x384xf32> to vector<8x128xf32>
    %22 = arith.addf %16, %19 : vector<8x128xf32>
    %23 = arith.negf %22 : vector<8x128xf32>
    %24 = math.exp %23 : vector<8x128xf32>
    %cst_15 = arith.constant 1.000000e+00 : f32
    %25 = vector.broadcast %cst_15 : f32 to vector<8x128xf32>
    %26 = arith.addf %25, %24 : vector<8x128xf32>
    %27 = arith.divf %25, %26 : vector<8x128xf32>
    %28 = arith.addf %17, %20 : vector<8x128xf32>
    %29 = arith.negf %28 : vector<8x128xf32>
    %30 = math.exp %29 : vector<8x128xf32>
    %cst_16 = arith.constant 1.000000e+00 : f32
    %31 = vector.broadcast %cst_16 : f32 to vector<8x128xf32>
    %32 = arith.addf %31, %30 : vector<8x128xf32>
    %33 = arith.divf %31, %32 : vector<8x128xf32>
    %34 = vector.broadcast %7 : vector<1x128xf32> to vector<8x128xf32>
    %35 = arith.addf %21, %34 : vector<8x128xf32>
    %36 = arith.mulf %27, %35 : vector<8x128xf32>
    %37 = arith.addf %18, %36 : vector<8x128xf32>
    %38 = math.tanh %37 : vector<8x128xf32>
    %cst_17 = arith.constant 1.000000e+00 : f32
    %39 = vector.broadcast %cst_17 : f32 to vector<8x128xf32>
    %40 = arith.subf %39, %33 : vector<8x128xf32>
    %41 = arith.mulf %40, %38 : vector<8x128xf32>
    %42 = arith.mulf %33, %8 : vector<8x128xf32>
    %43 = arith.addf %41, %42 : vector<8x128xf32>
    %c1_i32 = arith.constant 1 : i32
    %c8_i32_18 = arith.constant 8 : i32
    %44 = arith.muli %c1_i32, %c8_i32_18 : i32
    %45 = tpu.assume_multiple %44, 8 : i32
    %46 = arith.index_cast %45 : i32 to index
    %c0_19 = arith.constant 0 : index
    %47 = vector.load %arg10[%46, %c0_19] : memref<64x384xf32, #tpu.memory_space<vmem>>, vector<8x384xf32>
    %48 = arith.truncf %43 : vector<8x128xf32> to vector<8x128xbf16>
    %c0_20 = arith.constant 0 : index
    %c0_21 = arith.constant 0 : index
    %49 = vector.load %arg3[%c0_20, %c0_21] : memref<128x384xbf16, #tpu.memory_space<vmem>>, vector<128x384xbf16>
    %cst_22 = arith.constant dense<0.000000e+00> : vector<8x384xf32>
    %50 = tpu.matmul %48, %49, %cst_22 {dimension_numbers = #tpu.dot_dimension_numbers<[1], [0], [0], [1], [0, 0, 1, 1], [], []>} : vector<8x128xbf16>, vector<128x384xbf16>, vector<8x384xf32> -> vector<8x384xf32>
    %51 = vector.extract_strided_slice %47 {offsets = [0, 0], sizes = [8, 128], strides = [1, 1]} : vector<8x384xf32> to vector<8x128xf32>
    %52 = vector.extract_strided_slice %47 {offsets = [0, 128], sizes = [8, 128], strides = [1, 1]} : vector<8x384xf32> to vector<8x128xf32>
    %53 = vector.extract_strided_slice %47 {offsets = [0, 256], sizes = [8, 128], strides = [1, 1]} : vector<8x384xf32> to vector<8x128xf32>
    %54 = vector.extract_strided_slice %50 {offsets = [0, 0], sizes = [8, 128], strides = [1, 1]} : vector<8x384xf32> to vector<8x128xf32>
    %55 = vector.extract_strided_slice %50 {offsets = [0, 128], sizes = [8, 128], strides = [1, 1]} : vector<8x384xf32> to vector<8x128xf32>
    %56 = vector.extract_strided_slice %50 {offsets = [0, 256], sizes = [8, 128], strides = [1, 1]} : vector<8x384xf32> to vector<8x128xf32>
    %57 = arith.addf %51, %54 : vector<8x128xf32>
    %58 = arith.negf %57 : vector<8x128xf32>
    %59 = math.exp %58 : vector<8x128xf32>
    %cst_23 = arith.constant 1.000000e+00 : f32
    %60 = vector.broadcast %cst_23 : f32 to vector<8x128xf32>
    %61 = arith.addf %60, %59 : vector<8x128xf32>
    %62 = arith.divf %60, %61 : vector<8x128xf32>
    %63 = arith.addf %52, %55 : vector<8x128xf32>
    %64 = arith.negf %63 : vector<8x128xf32>
    %65 = math.exp %64 : vector<8x128xf32>
    %cst_24 = arith.constant 1.000000e+00 : f32
    %66 = vector.broadcast %cst_24 : f32 to vector<8x128xf32>
    %67 = arith.addf %66, %65 : vector<8x128xf32>
    %68 = arith.divf %66, %67 : vector<8x128xf32>
    %69 = vector.broadcast %7 : vector<1x128xf32> to vector<8x128xf32>
    %70 = arith.addf %56, %69 : vector<8x128xf32>
    %71 = arith.mulf %62, %70 : vector<8x128xf32>
    %72 = arith.addf %53, %71 : vector<8x128xf32>
    %73 = math.tanh %72 : vector<8x128xf32>
    %cst_25 = arith.constant 1.000000e+00 : f32
    %74 = vector.broadcast %cst_25 : f32 to vector<8x128xf32>
    %75 = arith.subf %74, %68 : vector<8x128xf32>
    %76 = arith.mulf %75, %73 : vector<8x128xf32>
    %77 = arith.mulf %68, %43 : vector<8x128xf32>
    %78 = arith.addf %76, %77 : vector<8x128xf32>
    %c2_i32 = arith.constant 2 : i32
    %c8_i32_26 = arith.constant 8 : i32
    %79 = arith.muli %c2_i32, %c8_i32_26 : i32
    %80 = tpu.assume_multiple %79, 8 : i32
    %81 = arith.index_cast %80 : i32 to index
    %c0_27 = arith.constant 0 : index
    %82 = vector.load %arg10[%81, %c0_27] : memref<64x384xf32, #tpu.memory_space<vmem>>, vector<8x384xf32>
    %83 = arith.truncf %78 : vector<8x128xf32> to vector<8x128xbf16>
    %c0_28 = arith.constant 0 : index
    %c0_29 = arith.constant 0 : index
    %84 = vector.load %arg3[%c0_28, %c0_29] : memref<128x384xbf16, #tpu.memory_space<vmem>>, vector<128x384xbf16>
    %cst_30 = arith.constant dense<0.000000e+00> : vector<8x384xf32>
    %85 = tpu.matmul %83, %84, %cst_30 {dimension_numbers = #tpu.dot_dimension_numbers<[1], [0], [0], [1], [0, 0, 1, 1], [], []>} : vector<8x128xbf16>, vector<128x384xbf16>, vector<8x384xf32> -> vector<8x384xf32>
    %86 = vector.extract_strided_slice %82 {offsets = [0, 0], sizes = [8, 128], strides = [1, 1]} : vector<8x384xf32> to vector<8x128xf32>
    %87 = vector.extract_strided_slice %82 {offsets = [0, 128], sizes = [8, 128], strides = [1, 1]} : vector<8x384xf32> to vector<8x128xf32>
    %88 = vector.extract_strided_slice %82 {offsets = [0, 256], sizes = [8, 128], strides = [1, 1]} : vector<8x384xf32> to vector<8x128xf32>
    %89 = vector.extract_strided_slice %85 {offsets = [0, 0], sizes = [8, 128], strides = [1, 1]} : vector<8x384xf32> to vector<8x128xf32>
    %90 = vector.extract_strided_slice %85 {offsets = [0, 128], sizes = [8, 128], strides = [1, 1]} : vector<8x384xf32> to vector<8x128xf32>
    %91 = vector.extract_strided_slice %85 {offsets = [0, 256], sizes = [8, 128], strides = [1, 1]} : vector<8x384xf32> to vector<8x128xf32>
    %92 = arith.addf %86, %89 : vector<8x128xf32>
    %93 = arith.negf %92 : vector<8x128xf32>
    %94 = math.exp %93 : vector<8x128xf32>
    %cst_31 = arith.constant 1.000000e+00 : f32
    %95 = vector.broadcast %cst_31 : f32 to vector<8x128xf32>
    %96 = arith.addf %95, %94 : vector<8x128xf32>
    %97 = arith.divf %95, %96 : vector<8x128xf32>
    %98 = arith.addf %87, %90 : vector<8x128xf32>
    %99 = arith.negf %98 : vector<8x128xf32>
    %100 = math.exp %99 : vector<8x128xf32>
    %cst_32 = arith.constant 1.000000e+00 : f32
    %101 = vector.broadcast %cst_32 : f32 to vector<8x128xf32>
    %102 = arith.addf %101, %100 : vector<8x128xf32>
    %103 = arith.divf %101, %102 : vector<8x128xf32>
    %104 = vector.broadcast %7 : vector<1x128xf32> to vector<8x128xf32>
    %105 = arith.addf %91, %104 : vector<8x128xf32>
    %106 = arith.mulf %97, %105 : vector<8x128xf32>
    %107 = arith.addf %88, %106 : vector<8x128xf32>
    %108 = math.tanh %107 : vector<8x128xf32>
    %cst_33 = arith.constant 1.000000e+00 : f32
    %109 = vector.broadcast %cst_33 : f32 to vector<8x128xf32>
    %110 = arith.subf %109, %103 : vector<8x128xf32>
    %111 = arith.mulf %110, %108 : vector<8x128xf32>
    %112 = arith.mulf %103, %78 : vector<8x128xf32>
    %113 = arith.addf %111, %112 : vector<8x128xf32>
    %c3_i32 = arith.constant 3 : i32
    %c8_i32_34 = arith.constant 8 : i32
    %114 = arith.muli %c3_i32, %c8_i32_34 : i32
    %115 = tpu.assume_multiple %114, 8 : i32
    %116 = arith.index_cast %115 : i32 to index
    %c0_35 = arith.constant 0 : index
    %117 = vector.load %arg10[%116, %c0_35] : memref<64x384xf32, #tpu.memory_space<vmem>>, vector<8x384xf32>
    %118 = arith.truncf %113 : vector<8x128xf32> to vector<8x128xbf16>
    %c0_36 = arith.constant 0 : index
    %c0_37 = arith.constant 0 : index
    %119 = vector.load %arg3[%c0_36, %c0_37] : memref<128x384xbf16, #tpu.memory_space<vmem>>, vector<128x384xbf16>
    %cst_38 = arith.constant dense<0.000000e+00> : vector<8x384xf32>
    %120 = tpu.matmul %118, %119, %cst_38 {dimension_numbers = #tpu.dot_dimension_numbers<[1], [0], [0], [1], [0, 0, 1, 1], [], []>} : vector<8x128xbf16>, vector<128x384xbf16>, vector<8x384xf32> -> vector<8x384xf32>
    %121 = vector.extract_strided_slice %117 {offsets = [0, 0], sizes = [8, 128], strides = [1, 1]} : vector<8x384xf32> to vector<8x128xf32>
    %122 = vector.extract_strided_slice %117 {offsets = [0, 128], sizes = [8, 128], strides = [1, 1]} : vector<8x384xf32> to vector<8x128xf32>
    %123 = vector.extract_strided_slice %117 {offsets = [0, 256], sizes = [8, 128], strides = [1, 1]} : vector<8x384xf32> to vector<8x128xf32>
    %124 = vector.extract_strided_slice %120 {offsets = [0, 0], sizes = [8, 128], strides = [1, 1]} : vector<8x384xf32> to vector<8x128xf32>
    %125 = vector.extract_strided_slice %120 {offsets = [0, 128], sizes = [8, 128], strides = [1, 1]} : vector<8x384xf32> to vector<8x128xf32>
    %126 = vector.extract_strided_slice %120 {offsets = [0, 256], sizes = [8, 128], strides = [1, 1]} : vector<8x384xf32> to vector<8x128xf32>
    %127 = arith.addf %121, %124 : vector<8x128xf32>
    %128 = arith.negf %127 : vector<8x128xf32>
    %129 = math.exp %128 : vector<8x128xf32>
    %cst_39 = arith.constant 1.000000e+00 : f32
    %130 = vector.broadcast %cst_39 : f32 to vector<8x128xf32>
    %131 = arith.addf %130, %129 : vector<8x128xf32>
    %132 = arith.divf %130, %131 : vector<8x128xf32>
    %133 = arith.addf %122, %125 : vector<8x128xf32>
    %134 = arith.negf %133 : vector<8x128xf32>
    %135 = math.exp %134 : vector<8x128xf32>
    %cst_40 = arith.constant 1.000000e+00 : f32
    %136 = vector.broadcast %cst_40 : f32 to vector<8x128xf32>
    %137 = arith.addf %136, %135 : vector<8x128xf32>
    %138 = arith.divf %136, %137 : vector<8x128xf32>
    %139 = vector.broadcast %7 : vector<1x128xf32> to vector<8x128xf32>
    %140 = arith.addf %126, %139 : vector<8x128xf32>
    %141 = arith.mulf %132, %140 : vector<8x128xf32>
    %142 = arith.addf %123, %141 : vector<8x128xf32>
    %143 = math.tanh %142 : vector<8x128xf32>
    %cst_41 = arith.constant 1.000000e+00 : f32
    %144 = vector.broadcast %cst_41 : f32 to vector<8x128xf32>
    %145 = arith.subf %144, %138 : vector<8x128xf32>
    %146 = arith.mulf %145, %143 : vector<8x128xf32>
    %147 = arith.mulf %138, %113 : vector<8x128xf32>
    %148 = arith.addf %146, %147 : vector<8x128xf32>
    %c4_i32 = arith.constant 4 : i32
    %c8_i32_42 = arith.constant 8 : i32
    %149 = arith.muli %c4_i32, %c8_i32_42 : i32
    %150 = tpu.assume_multiple %149, 8 : i32
    %151 = arith.index_cast %150 : i32 to index
    %c0_43 = arith.constant 0 : index
    %152 = vector.load %arg10[%151, %c0_43] : memref<64x384xf32, #tpu.memory_space<vmem>>, vector<8x384xf32>
    %153 = arith.truncf %148 : vector<8x128xf32> to vector<8x128xbf16>
    %c0_44 = arith.constant 0 : index
    %c0_45 = arith.constant 0 : index
    %154 = vector.load %arg3[%c0_44, %c0_45] : memref<128x384xbf16, #tpu.memory_space<vmem>>, vector<128x384xbf16>
    %cst_46 = arith.constant dense<0.000000e+00> : vector<8x384xf32>
    %155 = tpu.matmul %153, %154, %cst_46 {dimension_numbers = #tpu.dot_dimension_numbers<[1], [0], [0], [1], [0, 0, 1, 1], [], []>} : vector<8x128xbf16>, vector<128x384xbf16>, vector<8x384xf32> -> vector<8x384xf32>
    %156 = vector.extract_strided_slice %152 {offsets = [0, 0], sizes = [8, 128], strides = [1, 1]} : vector<8x384xf32> to vector<8x128xf32>
    %157 = vector.extract_strided_slice %152 {offsets = [0, 128], sizes = [8, 128], strides = [1, 1]} : vector<8x384xf32> to vector<8x128xf32>
    %158 = vector.extract_strided_slice %152 {offsets = [0, 256], sizes = [8, 128], strides = [1, 1]} : vector<8x384xf32> to vector<8x128xf32>
    %159 = vector.extract_strided_slice %155 {offsets = [0, 0], sizes = [8, 128], strides = [1, 1]} : vector<8x384xf32> to vector<8x128xf32>
    %160 = vector.extract_strided_slice %155 {offsets = [0, 128], sizes = [8, 128], strides = [1, 1]} : vector<8x384xf32> to vector<8x128xf32>
    %161 = vector.extract_strided_slice %155 {offsets = [0, 256], sizes = [8, 128], strides = [1, 1]} : vector<8x384xf32> to vector<8x128xf32>
    %162 = arith.addf %156, %159 : vector<8x128xf32>
    %163 = arith.negf %162 : vector<8x128xf32>
    %164 = math.exp %163 : vector<8x128xf32>
    %cst_47 = arith.constant 1.000000e+00 : f32
    %165 = vector.broadcast %cst_47 : f32 to vector<8x128xf32>
    %166 = arith.addf %165, %164 : vector<8x128xf32>
    %167 = arith.divf %165, %166 : vector<8x128xf32>
    %168 = arith.addf %157, %160 : vector<8x128xf32>
    %169 = arith.negf %168 : vector<8x128xf32>
    %170 = math.exp %169 : vector<8x128xf32>
    %cst_48 = arith.constant 1.000000e+00 : f32
    %171 = vector.broadcast %cst_48 : f32 to vector<8x128xf32>
    %172 = arith.addf %171, %170 : vector<8x128xf32>
    %173 = arith.divf %171, %172 : vector<8x128xf32>
    %174 = vector.broadcast %7 : vector<1x128xf32> to vector<8x128xf32>
    %175 = arith.addf %161, %174 : vector<8x128xf32>
    %176 = arith.mulf %167, %175 : vector<8x128xf32>
    %177 = arith.addf %158, %176 : vector<8x128xf32>
    %178 = math.tanh %177 : vector<8x128xf32>
    %cst_49 = arith.constant 1.000000e+00 : f32
    %179 = vector.broadcast %cst_49 : f32 to vector<8x128xf32>
    %180 = arith.subf %179, %173 : vector<8x128xf32>
    %181 = arith.mulf %180, %178 : vector<8x128xf32>
    %182 = arith.mulf %173, %148 : vector<8x128xf32>
    %183 = arith.addf %181, %182 : vector<8x128xf32>
    %c5_i32 = arith.constant 5 : i32
    %c8_i32_50 = arith.constant 8 : i32
    %184 = arith.muli %c5_i32, %c8_i32_50 : i32
    %185 = tpu.assume_multiple %184, 8 : i32
    %186 = arith.index_cast %185 : i32 to index
    %c0_51 = arith.constant 0 : index
    %187 = vector.load %arg10[%186, %c0_51] : memref<64x384xf32, #tpu.memory_space<vmem>>, vector<8x384xf32>
    %188 = arith.truncf %183 : vector<8x128xf32> to vector<8x128xbf16>
    %c0_52 = arith.constant 0 : index
    %c0_53 = arith.constant 0 : index
    %189 = vector.load %arg3[%c0_52, %c0_53] : memref<128x384xbf16, #tpu.memory_space<vmem>>, vector<128x384xbf16>
    %cst_54 = arith.constant dense<0.000000e+00> : vector<8x384xf32>
    %190 = tpu.matmul %188, %189, %cst_54 {dimension_numbers = #tpu.dot_dimension_numbers<[1], [0], [0], [1], [0, 0, 1, 1], [], []>} : vector<8x128xbf16>, vector<128x384xbf16>, vector<8x384xf32> -> vector<8x384xf32>
    %191 = vector.extract_strided_slice %187 {offsets = [0, 0], sizes = [8, 128], strides = [1, 1]} : vector<8x384xf32> to vector<8x128xf32>
    %192 = vector.extract_strided_slice %187 {offsets = [0, 128], sizes = [8, 128], strides = [1, 1]} : vector<8x384xf32> to vector<8x128xf32>
    %193 = vector.extract_strided_slice %187 {offsets = [0, 256], sizes = [8, 128], strides = [1, 1]} : vector<8x384xf32> to vector<8x128xf32>
    %194 = vector.extract_strided_slice %190 {offsets = [0, 0], sizes = [8, 128], strides = [1, 1]} : vector<8x384xf32> to vector<8x128xf32>
    %195 = vector.extract_strided_slice %190 {offsets = [0, 128], sizes = [8, 128], strides = [1, 1]} : vector<8x384xf32> to vector<8x128xf32>
    %196 = vector.extract_strided_slice %190 {offsets = [0, 256], sizes = [8, 128], strides = [1, 1]} : vector<8x384xf32> to vector<8x128xf32>
    %197 = arith.addf %191, %194 : vector<8x128xf32>
    %198 = arith.negf %197 : vector<8x128xf32>
    %199 = math.exp %198 : vector<8x128xf32>
    %cst_55 = arith.constant 1.000000e+00 : f32
    %200 = vector.broadcast %cst_55 : f32 to vector<8x128xf32>
    %201 = arith.addf %200, %199 : vector<8x128xf32>
    %202 = arith.divf %200, %201 : vector<8x128xf32>
    %203 = arith.addf %192, %195 : vector<8x128xf32>
    %204 = arith.negf %203 : vector<8x128xf32>
    %205 = math.exp %204 : vector<8x128xf32>
    %cst_56 = arith.constant 1.000000e+00 : f32
    %206 = vector.broadcast %cst_56 : f32 to vector<8x128xf32>
    %207 = arith.addf %206, %205 : vector<8x128xf32>
    %208 = arith.divf %206, %207 : vector<8x128xf32>
    %209 = vector.broadcast %7 : vector<1x128xf32> to vector<8x128xf32>
    %210 = arith.addf %196, %209 : vector<8x128xf32>
    %211 = arith.mulf %202, %210 : vector<8x128xf32>
    %212 = arith.addf %193, %211 : vector<8x128xf32>
    %213 = math.tanh %212 : vector<8x128xf32>
    %cst_57 = arith.constant 1.000000e+00 : f32
    %214 = vector.broadcast %cst_57 : f32 to vector<8x128xf32>
    %215 = arith.subf %214, %208 : vector<8x128xf32>
    %216 = arith.mulf %215, %213 : vector<8x128xf32>
    %217 = arith.mulf %208, %183 : vector<8x128xf32>
    %218 = arith.addf %216, %217 : vector<8x128xf32>
    %c6_i32 = arith.constant 6 : i32
    %c8_i32_58 = arith.constant 8 : i32
    %219 = arith.muli %c6_i32, %c8_i32_58 : i32
    %220 = tpu.assume_multiple %219, 8 : i32
    %221 = arith.index_cast %220 : i32 to index
    %c0_59 = arith.constant 0 : index
    %222 = vector.load %arg10[%221, %c0_59] : memref<64x384xf32, #tpu.memory_space<vmem>>, vector<8x384xf32>
    %223 = arith.truncf %218 : vector<8x128xf32> to vector<8x128xbf16>
    %c0_60 = arith.constant 0 : index
    %c0_61 = arith.constant 0 : index
    %224 = vector.load %arg3[%c0_60, %c0_61] : memref<128x384xbf16, #tpu.memory_space<vmem>>, vector<128x384xbf16>
    %cst_62 = arith.constant dense<0.000000e+00> : vector<8x384xf32>
    %225 = tpu.matmul %223, %224, %cst_62 {dimension_numbers = #tpu.dot_dimension_numbers<[1], [0], [0], [1], [0, 0, 1, 1], [], []>} : vector<8x128xbf16>, vector<128x384xbf16>, vector<8x384xf32> -> vector<8x384xf32>
    %226 = vector.extract_strided_slice %222 {offsets = [0, 0], sizes = [8, 128], strides = [1, 1]} : vector<8x384xf32> to vector<8x128xf32>
    %227 = vector.extract_strided_slice %222 {offsets = [0, 128], sizes = [8, 128], strides = [1, 1]} : vector<8x384xf32> to vector<8x128xf32>
    %228 = vector.extract_strided_slice %222 {offsets = [0, 256], sizes = [8, 128], strides = [1, 1]} : vector<8x384xf32> to vector<8x128xf32>
    %229 = vector.extract_strided_slice %225 {offsets = [0, 0], sizes = [8, 128], strides = [1, 1]} : vector<8x384xf32> to vector<8x128xf32>
    %230 = vector.extract_strided_slice %225 {offsets = [0, 128], sizes = [8, 128], strides = [1, 1]} : vector<8x384xf32> to vector<8x128xf32>
    %231 = vector.extract_strided_slice %225 {offsets = [0, 256], sizes = [8, 128], strides = [1, 1]} : vector<8x384xf32> to vector<8x128xf32>
    %232 = arith.addf %226, %229 : vector<8x128xf32>
    %233 = arith.negf %232 : vector<8x128xf32>
    %234 = math.exp %233 : vector<8x128xf32>
    %cst_63 = arith.constant 1.000000e+00 : f32
    %235 = vector.broadcast %cst_63 : f32 to vector<8x128xf32>
    %236 = arith.addf %235, %234 : vector<8x128xf32>
    %237 = arith.divf %235, %236 : vector<8x128xf32>
    %238 = arith.addf %227, %230 : vector<8x128xf32>
    %239 = arith.negf %238 : vector<8x128xf32>
    %240 = math.exp %239 : vector<8x128xf32>
    %cst_64 = arith.constant 1.000000e+00 : f32
    %241 = vector.broadcast %cst_64 : f32 to vector<8x128xf32>
    %242 = arith.addf %241, %240 : vector<8x128xf32>
    %243 = arith.divf %241, %242 : vector<8x128xf32>
    %244 = vector.broadcast %7 : vector<1x128xf32> to vector<8x128xf32>
    %245 = arith.addf %231, %244 : vector<8x128xf32>
    %246 = arith.mulf %237, %245 : vector<8x128xf32>
    %247 = arith.addf %228, %246 : vector<8x128xf32>
    %248 = math.tanh %247 : vector<8x128xf32>
    %cst_65 = arith.constant 1.000000e+00 : f32
    %249 = vector.broadcast %cst_65 : f32 to vector<8x128xf32>
    %250 = arith.subf %249, %243 : vector<8x128xf32>
    %251 = arith.mulf %250, %248 : vector<8x128xf32>
    %252 = arith.mulf %243, %218 : vector<8x128xf32>
    %253 = arith.addf %251, %252 : vector<8x128xf32>
    %c7_i32 = arith.constant 7 : i32
    %c8_i32_66 = arith.constant 8 : i32
    %254 = arith.muli %c7_i32, %c8_i32_66 : i32
    %255 = tpu.assume_multiple %254, 8 : i32
    %256 = arith.index_cast %255 : i32 to index
    %c0_67 = arith.constant 0 : index
    %257 = vector.load %arg10[%256, %c0_67] : memref<64x384xf32, #tpu.memory_space<vmem>>, vector<8x384xf32>
    %258 = arith.truncf %253 : vector<8x128xf32> to vector<8x128xbf16>
    %c0_68 = arith.constant 0 : index
    %c0_69 = arith.constant 0 : index
    %259 = vector.load %arg3[%c0_68, %c0_69] : memref<128x384xbf16, #tpu.memory_space<vmem>>, vector<128x384xbf16>
    %cst_70 = arith.constant dense<0.000000e+00> : vector<8x384xf32>
    %260 = tpu.matmul %258, %259, %cst_70 {dimension_numbers = #tpu.dot_dimension_numbers<[1], [0], [0], [1], [0, 0, 1, 1], [], []>} : vector<8x128xbf16>, vector<128x384xbf16>, vector<8x384xf32> -> vector<8x384xf32>
    %261 = vector.extract_strided_slice %257 {offsets = [0, 0], sizes = [8, 128], strides = [1, 1]} : vector<8x384xf32> to vector<8x128xf32>
    %262 = vector.extract_strided_slice %257 {offsets = [0, 128], sizes = [8, 128], strides = [1, 1]} : vector<8x384xf32> to vector<8x128xf32>
    %263 = vector.extract_strided_slice %257 {offsets = [0, 256], sizes = [8, 128], strides = [1, 1]} : vector<8x384xf32> to vector<8x128xf32>
    %264 = vector.extract_strided_slice %260 {offsets = [0, 0], sizes = [8, 128], strides = [1, 1]} : vector<8x384xf32> to vector<8x128xf32>
    %265 = vector.extract_strided_slice %260 {offsets = [0, 128], sizes = [8, 128], strides = [1, 1]} : vector<8x384xf32> to vector<8x128xf32>
    %266 = vector.extract_strided_slice %260 {offsets = [0, 256], sizes = [8, 128], strides = [1, 1]} : vector<8x384xf32> to vector<8x128xf32>
    %267 = arith.addf %261, %264 : vector<8x128xf32>
    %268 = arith.negf %267 : vector<8x128xf32>
    %269 = math.exp %268 : vector<8x128xf32>
    %cst_71 = arith.constant 1.000000e+00 : f32
    %270 = vector.broadcast %cst_71 : f32 to vector<8x128xf32>
    %271 = arith.addf %270, %269 : vector<8x128xf32>
    %272 = arith.divf %270, %271 : vector<8x128xf32>
    %273 = arith.addf %262, %265 : vector<8x128xf32>
    %274 = arith.negf %273 : vector<8x128xf32>
    %275 = math.exp %274 : vector<8x128xf32>
    %cst_72 = arith.constant 1.000000e+00 : f32
    %276 = vector.broadcast %cst_72 : f32 to vector<8x128xf32>
    %277 = arith.addf %276, %275 : vector<8x128xf32>
    %278 = arith.divf %276, %277 : vector<8x128xf32>
    %279 = vector.broadcast %7 : vector<1x128xf32> to vector<8x128xf32>
    %280 = arith.addf %266, %279 : vector<8x128xf32>
    %281 = arith.mulf %272, %280 : vector<8x128xf32>
    %282 = arith.addf %263, %281 : vector<8x128xf32>
    %283 = math.tanh %282 : vector<8x128xf32>
    %cst_73 = arith.constant 1.000000e+00 : f32
    %284 = vector.broadcast %cst_73 : f32 to vector<8x128xf32>
    %285 = arith.subf %284, %278 : vector<8x128xf32>
    %286 = arith.mulf %285, %283 : vector<8x128xf32>
    %287 = arith.mulf %278, %253 : vector<8x128xf32>
    %288 = arith.addf %286, %287 : vector<8x128xf32>
    %c8_i32_74 = arith.constant 8 : i32
    %c0_75 = arith.constant 0 : index
    %c0_76 = arith.constant 0 : index
    %289 = vector.load %arg9[%c0_75, %c0_76] : memref<8x128xf32, #tpu.memory_space<vmem>>, vector<8x128xf32>
    tpu.vector_store %arg9[%c0_75, %c0_76], %288 {strides = array<i32>} : memref<8x128xf32, #tpu.memory_space<vmem>>, vector<8x128xf32>,
    %cst_77 = arith.constant 0.000000e+00 : f32
    %290 = vector.broadcast %cst_77 : f32 to vector<8x128xf32>
    %291 = arith.maximumf %288, %290 : vector<8x128xf32>
    %292 = arith.truncf %291 : vector<8x128xf32> to vector<8x128xbf16>
    %c0_78 = arith.constant 0 : index
    %c0_79 = arith.constant 0 : index
    %293 = vector.load %arg6[%c0_78, %c0_79] : memref<128x256xbf16, #tpu.memory_space<vmem>>, vector<128x256xbf16>
    %cst_80 = arith.constant dense<0.000000e+00> : vector<8x256xf32>
    %294 = tpu.matmul %292, %293, %cst_80 {dimension_numbers = #tpu.dot_dimension_numbers<[1], [0], [0], [1], [0, 0, 1, 1], [], []>} : vector<8x128xbf16>, vector<128x256xbf16>, vector<8x256xf32> -> vector<8x256xf32>
    %c0_81 = arith.constant 0 : index
    %c0_82 = arith.constant 0 : index
    %295 = vector.load %arg7[%c0_81, %c0_82] : memref<1x256xf32, #tpu.memory_space<vmem>>, vector<1x256xf32>
    %296 = vector.broadcast %295 : vector<1x256xf32> to vector<8x256xf32>
    %297 = arith.addf %294, %296 : vector<8x256xf32>
    %c0_83 = arith.constant 0 : index
    %c0_84 = arith.constant 0 : index
    %298 = vector.load %arg8[%c0_83, %c0_84] : memref<8x256xf32, #tpu.memory_space<vmem>>, vector<8x256xf32>
    tpu.vector_store %arg8[%c0_83, %c0_84], %297 {strides = array<i32>} : memref<8x256xf32, #tpu.memory_space<vmem>>, vector<8x256xf32>,
    return
  }
}

</mosaic_0001>

<llo_original>
// kernel: grunet_forward.1
$region0: #{grunet_forward.1}
  #allocation0 [shape = 'u32[]', space=smem, size = 0x4, offset = 0x4, fixed_abs, tag = 'smem constant byte address 0x4 - core index']
  #allocation1 [shape = 'u32[72,128]{1,0:T(1,128)}', space=vmem, size = 0x9000, scoped, tag = 'internal scratch']
  #allocation2 [shape = 'f32[64,384]{1,0:T(8,128)}', space=vmem, size = 0x18000, scoped, tag = 'scratch operand']
  %s0 = inlined_call_operand.vmem [shape: bf16[64,16], index: 0, kind: input, shape index: {}]
  %s1 = inlined_call_operand.vmem [shape: f32[8,128], index: 1, kind: input, shape index: {}]
  %s2 = inlined_call_operand.vmem [shape: bf16[16,384], index: 2, kind: input, shape index: {}]
  %s3 = inlined_call_operand.hbm [shape: bf16[128,384], index: 3, kind: input, shape index: {}]
  %s4 = inlined_call_operand.vmem [shape: f32[1,384], index: 4, kind: input, shape index: {}]
  %s5 = inlined_call_operand.vmem [shape: f32[1,128], index: 5, kind: input, shape index: {}]
  %s6 = inlined_call_operand.vmem [shape: bf16[128,256], index: 6, kind: input, shape index: {}]
  %s7 = inlined_call_operand.vmem [shape: f32[1,256], index: 7, kind: input, shape index: {}]
  %s8 = inlined_call_operand.hbm [shape: f32[8,256], index: 8, kind: output, shape index: {0}]
  %s9 = inlined_call_operand.vmem [shape: f32[8,128], index: 9, kind: output, shape index: {1}]
  %10 = xla_tuple %s8, %s9
  %s11 = sld [smem:[#allocation0]]
  $region54: #{grunet_forward.1} parent=0
    _
  %s13 = ssub.s32 1, %s11
  %s14 = scalar_select 0, %s13, %s11
  $region1: #{grunet_forward.1} parent=0
    #allocation3 [shape = 'u8[98304]{0}', space=vmem, size = 0x18000, scoped, tag = 'input window, operand 3, single buffered']
    #allocation4 [shape = 's32[1]{0}', space=sflag, size = 0x4, scoped, tag = 'scoped memory for grunet_forward.1']
    #allocation5 [shape = 's32[1]{0}', space=sflag, size = 0x4, scoped, tag = 'scoped memory for grunet_forward.1']
    #allocation6 [shape = 'u8[8192]{0}', space=vmem, size = 0x2000, scoped, tag = 'output window, operand 0, single buffered']
    %15 = vsyncpa [#allocation4], 0
    %16 = vsyncpa [#allocation5], 0
    // Predicated region
    $region2: #{grunet_forward.1} parent=1 // pred_check
      _
    $region3: #{grunet_forward.1} parent=1 // pred_check_branch
      %18 = sbr.rel (0) target = $region5
    $region4: #{grunet_forward.1} parent=1 // pred_region
      _
    $region5: #{grunet_forward.1} parent=1 // pred_fallthru
      _
    // Predicated region
    $region6: #{grunet_forward.1} parent=1 // pred_check
      _
    $region7: #{grunet_forward.1} parent=1 // pred_check_branch
      %20 = sbr.rel (0) target = $region9
    $region8: #{grunet_forward.1} parent=1 // pred_region
      _
    $region9: #{grunet_forward.1} parent=1 // pred_fallthru
      _
    // Predicated region
    $region10: #{grunet_forward.1} parent=1 // pred_check
      _
    $region11: #{grunet_forward.1} parent=1 // pred_check_branch
      %22 = sbr.rel (0) target = $region13
    $region12: #{grunet_forward.1} parent=1 // pred_region
      _
    $region13: #{grunet_forward.1} parent=1 // pred_fallthru
      _
    // Predicated region
    $region14: #{grunet_forward.1} parent=1 // pred_check
      _
    $region15: #{grunet_forward.1} parent=1 // pred_check_branch
      %24 = sbr.rel (0) target = $region17
    $region16: #{grunet_forward.1} parent=1 // pred_region
      %26 = vsyncadd [#allocation4], 0
      %s27 = sshll.u32 %s3, 4
      %s28 = int_to_ptr.hbm [resolvable:$true] %s27
      %s29 = sshll.u32 [#allocation3], 4
      %s30 = int_to_ptr.vmem [resolvable:$true] %s29
      %35 = dma.hbm_to_vmem [thread:$0]  %s28, 3072, %s30, [#allocation4], 192, 192, 12
    $region17: #{grunet_forward.1} parent=1 // pred_fallthru
      _
    // Predicated region
    $region18: #{grunet_forward.1} parent=1 // pred_check
      _
    $region19: #{grunet_forward.1} parent=1 // pred_check_branch
      %37 = sbr.rel (0) target = $region21
    $region20: #{grunet_forward.1} parent=1 // pred_region
      _
    $region21: #{grunet_forward.1} parent=1 // pred_fallthru
      _
    // Predicated region
    $region22: #{grunet_forward.1} parent=1 // pred_check
      _
    $region23: #{grunet_forward.1} parent=1 // pred_check_branch
      %39 = sbr.rel (0) target = $region25
    $region24: #{grunet_forward.1} parent=1 // pred_region
      _
    $region25: #{grunet_forward.1} parent=1 // pred_fallthru
      _
    // Predicated region
    $region26: #{grunet_forward.1} parent=1 // pred_check
      _
    $region27: #{grunet_forward.1} parent=1 // pred_check_branch
      %41 = sbr.rel (0) target = $region29
    $region28: #{grunet_forward.1} parent=1 // pred_region
      _
    $region29: #{grunet_forward.1} parent=1 // pred_fallthru
      _
    // Predicated region
    $region30: #{grunet_forward.1} parent=1 // pred_check
      _
    $region31: #{grunet_forward.1} parent=1 // pred_check_branch
      %43 = sbr.rel (0) target = $region33
    $region32: #{grunet_forward.1} parent=1 // pred_region
      _
    $region33: #{grunet_forward.1} parent=1 // pred_fallthru
      _
    // Predicated region
    $region34: #{grunet_forward.1} parent=1 // pred_check
      _
    $region35: #{grunet_forward.1} parent=1 // pred_check_branch
      %45 = sbr.rel (0) target = $region37
    $region36: #{grunet_forward.1} parent=1 // pred_region
      %47 = dma.done [#allocation4], 3072
    $region37: #{grunet_forward.1} parent=1 // pred_fallthru
      _
    %v49 = vld [vmem:[%s0] sm:$0xf]
    %v50 = vld [vmem:[%s0 + $0x4] sm:$0xf]
    %v51 = vld [vmem:[%s0 + $0x8] sm:$0xf]
    %v52 = vld [vmem:[%s0 + $0xc] sm:$0xf]
    %v53 = vld [vmem:[%s0 + $0x10] sm:$0xf]
    %v54 = vld [vmem:[%s0 + $0x14] sm:$0xf]
    %v55 = vld [vmem:[%s0 + $0x18] sm:$0xf]
    %v56 = vld [vmem:[%s0 + $0x1c] sm:$0xf]
    %v57 = vld [vmem:[%s2] sm:$0xff]
    %v58 = vld [vmem:[%s2 + $0x8] sm:$0xf]
    %v59 = vld [vmem:[%s2 + $0xc] sm:$0xff]
    %v60 = vld [vmem:[%s2 + $0x14] sm:$0xf]
    %v61 = vld [vmem:[%s4] sm:$0x7]
    %v63 = vperm.slane %v61, 0
    %v64 = vperm.slane %v61, 1
    %v65 = vperm.slane %v61, 2
    %v77 = vunpack.c.l.b16 %v49
    %v78 = vunpack.c.l.b16 %v50
    %v79 = vunpack.c.l.b16 %v51
    %v80 = vunpack.c.l.b16 %v52
    %v81 = vunpack.c.l.b16 %v53
    %v82 = vunpack.c.l.b16 %v54
    %v83 = vunpack.c.l.b16 %v55
    %v84 = vunpack.c.l.b16 %v56
    %v85 = vpack.c.b16 %v78, %v77
    %v86 = vpack.c.b16 %v80, %v79
    %v87 = vpack.c.b16 %v82, %v81
    %v88 = vpack.c.b16 %v84, %v83
    %v93 = vunpack.c.l.b16 %v57
    %v94 = vunpack.c.h.b16 %v57
    %v95 = vunpack.c.l.b16 %v58
    %v96 = vunpack.c.l.b16 %v59
    %v97 = vunpack.c.h.b16 %v59
    %v98 = vunpack.c.l.b16 %v60
    %v99 = vpack.c.b16 %v96, %v93
    %v100 = vpack.c.b16 %v97, %v94
    %v101 = vpack.c.b16 %v98, %v95
    %vm105 = vcmask 130048
    %v107 = vsel %vm105, %v85, 0
    %v110 = vsel %vm105, %v86, 0
    %v113 = vsel %vm105, %v87, 0
    %v116 = vsel %vm105, %v88, 0
    %118 = vmatpush.bf16.msra.mxu0 0
    %119 = vmatpush.bf16.msra.mxu0 0
    %120 = vmatpush.bf16.msra.mxu0 0
    %121 = vmatpush.bf16.msra.mxu0 0
    %122 = vmatpush.bf16.msra.mxu0 0
    %123 = vmatpush.bf16.msra.mxu0 0
    %124 = vmatpush.bf16.msra.mxu0 0
    %125 = vmatpush.bf16.msra.mxu0 %v99
    %126 = vmatmul.bf16.gmra.mxu0 %v107
    %v127 = vpop.f32.mrf.mxu0
    %v128 = vadd.f32 %v63, %v127
    %v129 = vpop.f32.mrf.mxu0
    %v130 = vadd.f32 %v63, %v129
    %131 = vmatmul.bf16.gmra.mxu0 %v110
    %v132 = vpop.f32.mrf.mxu0
    %v133 = vadd.f32 %v63, %v132
    %v134 = vpop.f32.mrf.mxu0
    %v135 = vadd.f32 %v63, %v134
    %136 = vmatmul.bf16.gmra.mxu0 %v113
    %v137 = vpop.f32.mrf.mxu0
    %v138 = vadd.f32 %v63, %v137
    %v139 = vpop.f32.mrf.mxu0
    %v140 = vadd.f32 %v63, %v139
    %141 = vmatmul.bf16.gmra.mxu0 %v116
    %v142 = vpop.f32.mrf.mxu0
    %v143 = vadd.f32 %v63, %v142
    %v144 = vpop.f32.mrf.mxu0
    %v145 = vadd.f32 %v63, %v144
    %146 = vdwg.mxu0
    %147 = vmatpush.bf16.msra.mxu0 0
    %148 = vmatpush.bf16.msra.mxu0 0
    %149 = vmatpush.bf16.msra.mxu0 0
    %150 = vmatpush.bf16.msra.mxu0 0
    %151 = vmatpush.bf16.msra.mxu0 0
    %152 = vmatpush.bf16.msra.mxu0 0
    %153 = vmatpush.bf16.msra.mxu0 0
    %154 = vmatpush.bf16.msra.mxu0 %v100
    %155 = vmatmul.bf16.gmra.mxu0 %v107
    %v156 = vpop.f32.mrf.mxu0
    %v157 = vadd.f32 %v64, %v156
    %v158 = vpop.f32.mrf.mxu0
    %v159 = vadd.f32 %v64, %v158
    %160 = vmatmul.bf16.gmra.mxu0 %v110
    %v161 = vpop.f32.mrf.mxu0
    %v162 = vadd.f32 %v64, %v161
    %v163 = vpop.f32.mrf.mxu0
    %v164 = vadd.f32 %v64, %v163
    %165 = vmatmul.bf16.gmra.mxu0 %v113
    %v166 = vpop.f32.mrf.mxu0
    %v167 = vadd.f32 %v64, %v166
    %v168 = vpop.f32.mrf.mxu0
    %v169 = vadd.f32 %v64, %v168
    %170 = vmatmul.bf16.gmra.mxu0 %v116
    %v171 = vpop.f32.mrf.mxu0
    %v172 = vadd.f32 %v64, %v171
    %v173 = vpop.f32.mrf.mxu0
    %v174 = vadd.f32 %v64, %v173
    %175 = vdwg.mxu0
    %176 = vmatpush.bf16.msra.mxu0 0
    %177 = vmatpush.bf16.msra.mxu0 0
    %178 = vmatpush.bf16.msra.mxu0 0
    %179 = vmatpush.bf16.msra.mxu0 0
    %180 = vmatpush.bf16.msra.mxu0 0
    %181 = vmatpush.bf16.msra.mxu0 0
    %182 = vmatpush.bf16.msra.mxu0 0
    %183 = vmatpush.bf16.msra.mxu0 %v101
    %184 = vmatmul.bf16.gmra.mxu0 %v107
    %v185 = vpop.f32.mrf.mxu0
    %v186 = vadd.f32 %v65, %v185
    %v187 = vpop.f32.mrf.mxu0
    %v188 = vadd.f32 %v65, %v187
    %189 = vmatmul.bf16.gmra.mxu0 %v110
    %v190 = vpop.f32.mrf.mxu0
    %v191 = vadd.f32 %v65, %v190
    %v192 = vpop.f32.mrf.mxu0
    %v193 = vadd.f32 %v65, %v192
    %194 = vmatmul.bf16.gmra.mxu0 %v113
    %v195 = vpop.f32.mrf.mxu0
    %v196 = vadd.f32 %v65, %v195
    %v197 = vpop.f32.mrf.mxu0
    %v198 = vadd.f32 %v65, %v197
    %199 = vmatmul.bf16.gmra.mxu0 %v116
    %v200 = vpop.f32.mrf.mxu0
    %v201 = vadd.f32 %v65, %v200
    %v202 = vpop.f32.mrf.mxu0
    %v203 = vadd.f32 %v65, %v202
    %204 = vdwg.mxu0
    %205 = vst [vmem:[#allocation2] sm:$0xff] %v128
    %206 = vst [vmem:[#allocation2 + $0x8] sm:$0xff] %v157
    %207 = vst [vmem:[#allocation2 + $0x10] sm:$0xff] %v186
    %208 = vst [vmem:[#allocation2 + $0x18] sm:$0xff] %v130
    %209 = vst [vmem:[#allocation2 + $0x20] sm:$0xff] %v159
    %210 = vst [vmem:[#allocation2 + $0x28] sm:$0xff] %v188
    %211 = vst [vmem:[#allocation2 + $0x30] sm:$0xff] %v133
    %212 = vst [vmem:[#allocation2 + $0x38] sm:$0xff] %v162
    %213 = vst [vmem:[#allocation2 + $0x40] sm:$0xff] %v191
    %214 = vst [vmem:[#allocation2 + $0x48] sm:$0xff] %v135
    %215 = vst [vmem:[#allocation2 + $0x50] sm:$0xff] %v164
    %216 = vst [vmem:[#allocation2 + $0x58] sm:$0xff] %v193
    %217 = vst [vmem:[#allocation2 + $0x60] sm:$0xff] %v138
    %218 = vst [vmem:[#allocation2 + $0x68] sm:$0xff] %v167
    %219 = vst [vmem:[#allocation2 + $0x70] sm:$0xff] %v196
    %220 = vst [vmem:[#allocation2 + $0x78] sm:$0xff] %v140
    %221 = vst [vmem:[#allocation2 + $0x80] sm:$0xff] %v169
    %222 = vst [vmem:[#allocation2 + $0x88] sm:$0xff] %v198
    %223 = vst [vmem:[#allocation2 + $0x90] sm:$0xff] %v143
    %224 = vst [vmem:[#allocation2 + $0x98] sm:$0xff] %v172
    %225 = vst [vmem:[#allocation2 + $0xa0] sm:$0xff] %v201
    %226 = vst [vmem:[#allocation2 + $0xa8] sm:$0xff] %v145
    %227 = vst [vmem:[#allocation2 + $0xb0] sm:$0xff] %v174
    %228 = vst [vmem:[#allocation2 + $0xb8] sm:$0xff] %v203
    %v229 = vld [vmem:[%s5] sm:$0x1]
    %v230 = vld [vmem:[%s1] sm:$0xff]
    %s231 = smul.u32 0, 3
    %s232 = smul.addr %s231, 8
    %s233 = scalar_lea.vmem [#allocation2], %s232
    %v234 = vld [vmem:[%s233] sm:$0xff]
    %v235 = vld [vmem:[%s233 + $0x8] sm:$0xff]
    %v236 = vld [vmem:[%s233 + $0x10] sm:$0xff]
    %v237 = vpack.c.bf16 %v230, %v230
    %v238 = vld [vmem:[#allocation3] sm:$0xff]
    %v239 = vld [vmem:[#allocation3 + $0x8] sm:$0xf]
    %v240 = vld [vmem:[#allocation3 + $0xc] sm:$0xff]
    %v241 = vld [vmem:[#allocation3 + $0x14] sm:$0xf]
    %v242 = vld [vmem:[#allocation3 + $0x18] sm:$0xff]
    %v243 = vld [vmem:[#allocation3 + $0x20] sm:$0xf]
    %v244 = vld [vmem:[#allocation3 + $0x24] sm:$0xff]
    %v245 = vld [vmem:[#allocation3 + $0x2c] sm:$0xf]
    %v246 = vld [vmem:[#allocation3 + $0x30] sm:$0xff]
    %v247 = vld [vmem:[#allocation3 + $0x38] sm:$0xf]
    %v248 = vld [vmem:[#allocation3 + $0x3c] sm:$0xff]
    %v249 = vld [vmem:[#allocation3 + $0x44] sm:$0xf]
    %v250 = vld [vmem:[#allocation3 + $0x48] sm:$0xff]
    %v251 = vld [vmem:[#allocation3 + $0x50] sm:$0xf]
    %v252 = vld [vmem:[#allocation3 + $0x54] sm:$0xff]
    %v253 = vld [vmem:[#allocation3 + $0x5c] sm:$0xf]
    %v254 = vld [vmem:[#allocation3 + $0x60] sm:$0xff]
    %v255 = vld [vmem:[#allocation3 + $0x68] sm:$0xf]
    %v256 = vld [vmem:[#allocation3 + $0x6c] sm:$0xff]
    %v257 = vld [vmem:[#allocation3 + $0x74] sm:$0xf]
    %v258 = vld [vmem:[#allocation3 + $0x78] sm:$0xff]
    %v259 = vld [vmem:[#allocation3 + $0x80] sm:$0xf]
    %v260 = vld [vmem:[#allocation3 + $0x84] sm:$0xff]
    %v261 = vld [vmem:[#allocation3 + $0x8c] sm:$0xf]
    %v262 = vld [vmem:[#allocation3 + $0x90] sm:$0xff]
    %v263 = vld [vmem:[#allocation3 + $0x98] sm:$0xf]
    %v264 = vld [vmem:[#allocation3 + $0x9c] sm:$0xff]
    %v265 = vld [vmem:[#allocation3 + $0xa4] sm:$0xf]
    %v266 = vld [vmem:[#allocation3 + $0xa8] sm:$0xff]
    %v267 = vld [vmem:[#allocation3 + $0xb0] sm:$0xf]
    %v268 = vld [vmem:[#allocation3 + $0xb4] sm:$0xff]
    %v269 = vld [vmem:[#allocation3 + $0xbc] sm:$0xf]
    %v302 = vunpack.c.l.b16 %v238
    %v303 = vunpack.c.h.b16 %v238
    %v304 = vunpack.c.l.b16 %v239
    %v305 = vunpack.c.l.b16 %v240
    %v306 = vunpack.c.h.b16 %v240
    %v307 = vunpack.c.l.b16 %v241
    %v308 = vunpack.c.l.b16 %v242
    %v309 = vunpack.c.h.b16 %v242
    %v310 = vunpack.c.l.b16 %v243
    %v311 = vunpack.c.l.b16 %v244
    %v312 = vunpack.c.h.b16 %v244
    %v313 = vunpack.c.l.b16 %v245
    %v314 = vunpack.c.l.b16 %v246
    %v315 = vunpack.c.h.b16 %v246
    %v316 = vunpack.c.l.b16 %v247
    %v317 = vunpack.c.l.b16 %v248
    %v318 = vunpack.c.h.b16 %v248
    %v319 = vunpack.c.l.b16 %v249
    %v320 = vunpack.c.l.b16 %v250
    %v321 = vunpack.c.h.b16 %v250
    %v322 = vunpack.c.l.b16 %v251
    %v323 = vunpack.c.l.b16 %v252
    %v324 = vunpack.c.h.b16 %v252
    %v325 = vunpack.c.l.b16 %v253
    %v326 = vunpack.c.l.b16 %v254
    %v327 = vunpack.c.h.b16 %v254
    %v328 = vunpack.c.l.b16 %v255
    %v329 = vunpack.c.l.b16 %v256
    %v330 = vunpack.c.h.b16 %v256
    %v331 = vunpack.c.l.b16 %v257
    %v332 = vunpack.c.l.b16 %v258
    %v333 = vunpack.c.h.b16 %v258
    %v334 = vunpack.c.l.b16 %v259
    %v335 = vunpack.c.l.b16 %v260
    %v336 = vunpack.c.h.b16 %v260
    %v337 = vunpack.c.l.b16 %v261
    %v338 = vunpack.c.l.b16 %v262
    %v339 = vunpack.c.h.b16 %v262
    %v340 = vunpack.c.l.b16 %v263
    %v341 = vunpack.c.l.b16 %v264
    %v342 = vunpack.c.h.b16 %v264
    %v343 = vunpack.c.l.b16 %v265
    %v344 = vunpack.c.l.b16 %v266
    %v345 = vunpack.c.h.b16 %v266
    %v346 = vunpack.c.l.b16 %v267
    %v347 = vunpack.c.l.b16 %v268
    %v348 = vunpack.c.h.b16 %v268
    %v349 = vunpack.c.l.b16 %v269
    %v350 = vpack.c.b16 %v305, %v302
    %v351 = vpack.c.b16 %v306, %v303
    %v352 = vpack.c.b16 %v307, %v304
    %v353 = vpack.c.b16 %v311, %v308
    %v354 = vpack.c.b16 %v312, %v309
    %v355 = vpack.c.b16 %v313, %v310
    %v356 = vpack.c.b16 %v317, %v314
    %v357 = vpack.c.b16 %v318, %v315
    %v358 = vpack.c.b16 %v319, %v316
    %v359 = vpack.c.b16 %v323, %v320
    %v360 = vpack.c.b16 %v324, %v321
    %v361 = vpack.c.b16 %v325, %v322
    %v362 = vpack.c.b16 %v329, %v326
    %v363 = vpack.c.b16 %v330, %v327
    %v364 = vpack.c.b16 %v331, %v328
    %v365 = vpack.c.b16 %v335, %v332
    %v366 = vpack.c.b16 %v336, %v333
    %v367 = vpack.c.b16 %v337, %v334
    %v368 = vpack.c.b16 %v341, %v338
    %v369 = vpack.c.b16 %v342, %v339
    %v370 = vpack.c.b16 %v343, %v340
    %v371 = vpack.c.b16 %v347, %v344
    %v372 = vpack.c.b16 %v348, %v345
    %v373 = vpack.c.b16 %v349, %v346
    %398 = vmatpush.bf16.msra.mxu0 %v371
    %399 = vmatpush.bf16.msra.mxu0 %v368
    %400 = vmatpush.bf16.msra.mxu0 %v365
    %401 = vmatpush.bf16.msra.mxu0 %v362
    %402 = vmatpush.bf16.msra.mxu0 %v359
    %403 = vmatpush.bf16.msra.mxu0 %v356
    %404 = vmatpush.bf16.msra.mxu0 %v353
    %405 = vmatpush.bf16.msra.mxu0 %v350
    %406 = vmatmul.bf16.gmra.mxu0 %v237
    %v407 = vpop.f32.mrf.mxu0
    %v408 = vadd.f32 0.0, %v407
    %v409 = vpop.f32.mrf.mxu0
    %410 = vdwg.mxu0
    %411 = vmatpush.bf16.msra.mxu0 %v372
    %412 = vmatpush.bf16.msra.mxu0 %v369
    %413 = vmatpush.bf16.msra.mxu0 %v366
    %414 = vmatpush.bf16.msra.mxu0 %v363
    %415 = vmatpush.bf16.msra.mxu0 %v360
    %416 = vmatpush.bf16.msra.mxu0 %v357
    %417 = vmatpush.bf16.msra.mxu0 %v354
    %418 = vmatpush.bf16.msra.mxu0 %v351
    %419 = vmatmul.bf16.gmra.mxu0 %v237
    %v420 = vpop.f32.mrf.mxu0
    %v421 = vadd.f32 0.0, %v420
    %v422 = vpop.f32.mrf.mxu0
    %423 = vdwg.mxu0
    %424 = vmatpush.bf16.msra.mxu0 %v373
    %425 = vmatpush.bf16.msra.mxu0 %v370
    %426 = vmatpush.bf16.msra.mxu0 %v367
    %427 = vmatpush.bf16.msra.mxu0 %v364
    %428 = vmatpush.bf16.msra.mxu0 %v361
    %429 = vmatpush.bf16.msra.mxu0 %v358
    %430 = vmatpush.bf16.msra.mxu0 %v355
    %431 = vmatpush.bf16.msra.mxu0 %v352
    %432 = vmatmul.bf16.gmra.mxu0 %v237
    %v433 = vpop.f32.mrf.mxu0
    %v434 = vadd.f32 0.0, %v433
    %v435 = vpop.f32.mrf.mxu0
    %436 = vdwg.mxu0
    %v437 = vadd.f32 %v234, %v408
    %v438 = vxor.u32 %v437, 2147483648
    %v439 = vmul.f32 %v438, 1.442695
    %v440 = vpow.pop %v439
    %v441 = vadd.f32 %v440, 1.0
    %v442 = vrcp.pop %v441
    %v443 = vmul.f32 %v441, %v442
    %v444 = vsub.f32 1.0, %v443
    %v445 = vmul.f32 %v442, %v444
    %v446 = vadd.f32 %v442, %v445
    %vm447 = vweird.f32 %v441
    %vm448 = vweird.f32 %v442
    %vm449 = vmor %vm447, %vm448
    %v450 = vsel %vm449, %v442, %v446
    %v451 = vand.u32 2147483647, %v441
    %vm452 = vcmp.eq.f32.partialorder %v451, 8.507059e+37
    %v453 = vand.u32 %v441, 2147483648
    %v454 = vor.u32 1.1754944e-38, %v453
    %v455 = vsel %vm452, %v454, %v450
    %v456 = vmul.f32 1.0, %v455
    %v457 = vadd.f32 %v235, %v421
    %v458 = vxor.u32 %v457, 2147483648
    %v459 = vmul.f32 %v458, 1.442695
    %v460 = vpow.pop %v459
    %v461 = vadd.f32 %v460, 1.0
    %v462 = vrcp.pop %v461
    %v463 = vmul.f32 %v461, %v462
    %v464 = vsub.f32 1.0, %v463
    %v465 = vmul.f32 %v462, %v464
    %v466 = vadd.f32 %v462, %v465
    %vm467 = vweird.f32 %v461
    %vm468 = vweird.f32 %v462
    %vm469 = vmor %vm467, %vm468
    %v470 = vsel %vm469, %v462, %v466
    %v471 = vand.u32 2147483647, %v461
    %vm472 = vcmp.eq.f32.partialorder %v471, 8.507059e+37
    %v473 = vand.u32 %v461, 2147483648
    %v474 = vor.u32 1.1754944e-38, %v473
    %v475 = vsel %vm472, %v474, %v470
    %v476 = vmul.f32 1.0, %v475
    %v478 = vperm.slane %v229, 0
    %v480 = vadd.f32 %v434, %v478
    %v481 = vmul.f32 %v456, %v480
    %v482 = vadd.f32 %v236, %v481
    %v483 = vtanh.pop %v482
    %v484 = vsub.f32 1.0, %v476
    %v485 = vmul.f32 %v484, %v483
    %v486 = vmul.f32 %v476, %v230
    %v487 = vadd.f32 %v485, %v486
    %s488 = smul.u32 1, 3
    %s489 = smul.addr %s488, 8
    %s490 = scalar_lea.vmem [#allocation2], %s489
    %v491 = vld [vmem:[%s490] sm:$0xff]
    %v492 = vld [vmem:[%s490 + $0x8] sm:$0xff]
    %v493 = vld [vmem:[%s490 + $0x10] sm:$0xff]
    %v494 = vpack.c.bf16 %v487, %v487
    %495 = vmatpush.bf16.msra.mxu0 %v371
    %496 = vmatpush.bf16.msra.mxu0 %v368
    %497 = vmatpush.bf16.msra.mxu0 %v365
    %498 = vmatpush.bf16.msra.mxu0 %v362
    %499 = vmatpush.bf16.msra.mxu0 %v359
    %500 = vmatpush.bf16.msra.mxu0 %v356
    %501 = vmatpush.bf16.msra.mxu0 %v353
    %502 = vmatpush.bf16.msra.mxu0 %v350
    %503 = vmatmul.bf16.gmra.mxu0 %v494
    %v504 = vpop.f32.mrf.mxu0
    %v505 = vadd.f32 0.0, %v504
    %v506 = vpop.f32.mrf.mxu0
    %507 = vdwg.mxu0
    %508 = vmatpush.bf16.msra.mxu0 %v372
    %509 = vmatpush.bf16.msra.mxu0 %v369
    %510 = vmatpush.bf16.msra.mxu0 %v366
    %511 = vmatpush.bf16.msra.mxu0 %v363
    %512 = vmatpush.bf16.msra.mxu0 %v360
    %513 = vmatpush.bf16.msra.mxu0 %v357
    %514 = vmatpush.bf16.msra.mxu0 %v354
    %515 = vmatpush.bf16.msra.mxu0 %v351
    %516 = vmatmul.bf16.gmra.mxu0 %v494
    %v517 = vpop.f32.mrf.mxu0
    %v518 = vadd.f32 0.0, %v517
    %v519 = vpop.f32.mrf.mxu0
    %520 = vdwg.mxu0
    %521 = vmatpush.bf16.msra.mxu0 %v373
    %522 = vmatpush.bf16.msra.mxu0 %v370
    %523 = vmatpush.bf16.msra.mxu0 %v367
    %524 = vmatpush.bf16.msra.mxu0 %v364
    %525 = vmatpush.bf16.msra.mxu0 %v361
    %526 = vmatpush.bf16.msra.mxu0 %v358
    %527 = vmatpush.bf16.msra.mxu0 %v355
    %528 = vmatpush.bf16.msra.mxu0 %v352
    %529 = vmatmul.bf16.gmra.mxu0 %v494
    %v530 = vpop.f32.mrf.mxu0
    %v531 = vadd.f32 0.0, %v530
    %v532 = vpop.f32.mrf.mxu0
    %533 = vdwg.mxu0
    %v534 = vadd.f32 %v491, %v505
    %v535 = vxor.u32 %v534, 2147483648
    %v536 = vmul.f32 %v535, 1.442695
    %v537 = vpow.pop %v536
    %v538 = vadd.f32 %v537, 1.0
    %v539 = vrcp.pop %v538
    %v540 = vmul.f32 %v538, %v539
    %v541 = vsub.f32 1.0, %v540
    %v542 = vmul.f32 %v539, %v541
    %v543 = vadd.f32 %v539, %v542
    %vm544 = vweird.f32 %v538
    %vm545 = vweird.f32 %v539
    %vm546 = vmor %vm544, %vm545
    %v547 = vsel %vm546, %v539, %v543
    %v548 = vand.u32 2147483647, %v538
    %vm549 = vcmp.eq.f32.partialorder %v548, 8.507059e+37
    %v550 = vand.u32 %v538, 2147483648
    %v551 = vor.u32 1.1754944e-38, %v550
    %v552 = vsel %vm549, %v551, %v547
    %v553 = vmul.f32 1.0, %v552
    %v554 = vadd.f32 %v492, %v518
    %v555 = vxor.u32 %v554, 2147483648
    %v556 = vmul.f32 %v555, 1.442695
    %v557 = vpow.pop %v556
    %v558 = vadd.f32 %v557, 1.0
    %v559 = vrcp.pop %v558
    %v560 = vmul.f32 %v558, %v559
    %v561 = vsub.f32 1.0, %v560
    %v562 = vmul.f32 %v559, %v561
    %v563 = vadd.f32 %v559, %v562
    %vm564 = vweird.f32 %v558
    %vm565 = vweird.f32 %v559
    %vm566 = vmor %vm564, %vm565
    %v567 = vsel %vm566, %v559, %v563
    %v568 = vand.u32 2147483647, %v558
    %vm569 = vcmp.eq.f32.partialorder %v568, 8.507059e+37
    %v570 = vand.u32 %v558, 2147483648
    %v571 = vor.u32 1.1754944e-38, %v570
    %v572 = vsel %vm569, %v571, %v567
    %v573 = vmul.f32 1.0, %v572
    %v574 = vadd.f32 %v531, %v478
    %v575 = vmul.f32 %v553, %v574
    %v576 = vadd.f32 %v493, %v575
    %v577 = vtanh.pop %v576
    %v578 = vsub.f32 1.0, %v573
    %v579 = vmul.f32 %v578, %v577
    %v580 = vmul.f32 %v573, %v487
    %v581 = vadd.f32 %v579, %v580
    %s582 = smul.u32 2, 3
    %s583 = smul.addr %s582, 8
    %s584 = scalar_lea.vmem [#allocation2], %s583
    %v585 = vld [vmem:[%s584] sm:$0xff]
    %v586 = vld [vmem:[%s584 + $0x8] sm:$0xff]
    %v587 = vld [vmem:[%s584 + $0x10] sm:$0xff]
    %v588 = vpack.c.bf16 %v581, %v581
    %589 = vmatpush.bf16.msra.mxu0 %v371
    %590 = vmatpush.bf16.msra.mxu0 %v368
    %591 = vmatpush.bf16.msra.mxu0 %v365
    %592 = vmatpush.bf16.msra.mxu0 %v362
    %593 = vmatpush.bf16.msra.mxu0 %v359
    %594 = vmatpush.bf16.msra.mxu0 %v356
    %595 = vmatpush.bf16.msra.mxu0 %v353
    %596 = vmatpush.bf16.msra.mxu0 %v350
    %597 = vmatmul.bf16.gmra.mxu0 %v588
    %v598 = vpop.f32.mrf.mxu0
    %v599 = vadd.f32 0.0, %v598
    %v600 = vpop.f32.mrf.mxu0
    %601 = vdwg.mxu0
    %602 = vmatpush.bf16.msra.mxu0 %v372
    %603 = vmatpush.bf16.msra.mxu0 %v369
    %604 = vmatpush.bf16.msra.mxu0 %v366
    %605 = vmatpush.bf16.msra.mxu0 %v363
    %606 = vmatpush.bf16.msra.mxu0 %v360
    %607 = vmatpush.bf16.msra.mxu0 %v357
    %608 = vmatpush.bf16.msra.mxu0 %v354
    %609 = vmatpush.bf16.msra.mxu0 %v351
    %610 = vmatmul.bf16.gmra.mxu0 %v588
    %v611 = vpop.f32.mrf.mxu0
    %v612 = vadd.f32 0.0, %v611
    %v613 = vpop.f32.mrf.mxu0
    %614 = vdwg.mxu0
    %615 = vmatpush.bf16.msra.mxu0 %v373
    %616 = vmatpush.bf16.msra.mxu0 %v370
    %617 = vmatpush.bf16.msra.mxu0 %v367
    %618 = vmatpush.bf16.msra.mxu0 %v364
    %619 = vmatpush.bf16.msra.mxu0 %v361
    %620 = vmatpush.bf16.msra.mxu0 %v358
    %621 = vmatpush.bf16.msra.mxu0 %v355
    %622 = vmatpush.bf16.msra.mxu0 %v352
    %623 = vmatmul.bf16.gmra.mxu0 %v588
    %v624 = vpop.f32.mrf.mxu0
    %v625 = vadd.f32 0.0, %v624
    %v626 = vpop.f32.mrf.mxu0
    %627 = vdwg.mxu0
    %v628 = vadd.f32 %v585, %v599
    %v629 = vxor.u32 %v628, 2147483648
    %v630 = vmul.f32 %v629, 1.442695
    %v631 = vpow.pop %v630
    %v632 = vadd.f32 %v631, 1.0
    %v633 = vrcp.pop %v632
    %v634 = vmul.f32 %v632, %v633
    %v635 = vsub.f32 1.0, %v634
    %v636 = vmul.f32 %v633, %v635
    %v637 = vadd.f32 %v633, %v636
    %vm638 = vweird.f32 %v632
    %vm639 = vweird.f32 %v633
    %vm640 = vmor %vm638, %vm639
    %v641 = vsel %vm640, %v633, %v637
    %v642 = vand.u32 2147483647, %v632
    %vm643 = vcmp.eq.f32.partialorder %v642, 8.507059e+37
    %v644 = vand.u32 %v632, 2147483648
    %v645 = vor.u32 1.1754944e-38, %v644
    %v646 = vsel %vm643, %v645, %v641
    %v647 = vmul.f32 1.0, %v646
    %v648 = vadd.f32 %v586, %v612
    %v649 = vxor.u32 %v648, 2147483648
    %v650 = vmul.f32 %v649, 1.442695
    %v651 = vpow.pop %v650
    %v652 = vadd.f32 %v651, 1.0
    %v653 = vrcp.pop %v652
    %v654 = vmul.f32 %v652, %v653
    %v655 = vsub.f32 1.0, %v654
    %v656 = vmul.f32 %v653, %v655
    %v657 = vadd.f32 %v653, %v656
    %vm658 = vweird.f32 %v652
    %vm659 = vweird.f32 %v653
    %vm660 = vmor %vm658, %vm659
    %v661 = vsel %vm660, %v653, %v657
    %v662 = vand.u32 2147483647, %v652
    %vm663 = vcmp.eq.f32.partialorder %v662, 8.507059e+37
    %v664 = vand.u32 %v652, 2147483648
    %v665 = vor.u32 1.1754944e-38, %v664
    %v666 = vsel %vm663, %v665, %v661
    %v667 = vmul.f32 1.0, %v666
    %v668 = vadd.f32 %v625, %v478
    %v669 = vmul.f32 %v647, %v668
    %v670 = vadd.f32 %v587, %v669
    %v671 = vtanh.pop %v670
    %v672 = vsub.f32 1.0, %v667
    %v673 = vmul.f32 %v672, %v671
    %v674 = vmul.f32 %v667, %v581
    %v675 = vadd.f32 %v673, %v674
    %s676 = smul.u32 3, 3
    %s677 = smul.addr %s676, 8
    %s678 = scalar_lea.vmem [#allocation2], %s677
    %v679 = vld [vmem:[%s678] sm:$0xff]
    %v680 = vld [vmem:[%s678 + $0x8] sm:$0xff]
    %v681 = vld [vmem:[%s678 + $0x10] sm:$0xff]
    %v682 = vpack.c.bf16 %v675, %v675
    %683 = vmatpush.bf16.msra.mxu0 %v371
    %684 = vmatpush.bf16.msra.mxu0 %v368
    %685 = vmatpush.bf16.msra.mxu0 %v365
    %686 = vmatpush.bf16.msra.mxu0 %v362
    %687 = vmatpush.bf16.msra.mxu0 %v359
    %688 = vmatpush.bf16.msra.mxu0 %v356
    %689 = vmatpush.bf16.msra.mxu0 %v353
    %690 = vmatpush.bf16.msra.mxu0 %v350
    %691 = vmatmul.bf16.gmra.mxu0 %v682
    %v692 = vpop.f32.mrf.mxu0
    %v693 = vadd.f32 0.0, %v692
    %v694 = vpop.f32.mrf.mxu0
    %695 = vdwg.mxu0
    %696 = vmatpush.bf16.msra.mxu0 %v372
    %697 = vmatpush.bf16.msra.mxu0 %v369
    %698 = vmatpush.bf16.msra.mxu0 %v366
    %699 = vmatpush.bf16.msra.mxu0 %v363
    %700 = vmatpush.bf16.msra.mxu0 %v360
    %701 = vmatpush.bf16.msra.mxu0 %v357
    %702 = vmatpush.bf16.msra.mxu0 %v354
    %703 = vmatpush.bf16.msra.mxu0 %v351
    %704 = vmatmul.bf16.gmra.mxu0 %v682
    %v705 = vpop.f32.mrf.mxu0
    %v706 = vadd.f32 0.0, %v705
    %v707 = vpop.f32.mrf.mxu0
    %708 = vdwg.mxu0
    %709 = vmatpush.bf16.msra.mxu0 %v373
    %710 = vmatpush.bf16.msra.mxu0 %v370
    %711 = vmatpush.bf16.msra.mxu0 %v367
    %712 = vmatpush.bf16.msra.mxu0 %v364
    %713 = vmatpush.bf16.msra.mxu0 %v361
    %714 = vmatpush.bf16.msra.mxu0 %v358
    %715 = vmatpush.bf16.msra.mxu0 %v355
    %716 = vmatpush.bf16.msra.mxu0 %v352
    %717 = vmatmul.bf16.gmra.mxu0 %v682
    %v718 = vpop.f32.mrf.mxu0
    %v719 = vadd.f32 0.0, %v718
    %v720 = vpop.f32.mrf.mxu0
    %721 = vdwg.mxu0
    %v722 = vadd.f32 %v679, %v693
    %v723 = vxor.u32 %v722, 2147483648
    %v724 = vmul.f32 %v723, 1.442695
    %v725 = vpow.pop %v724
    %v726 = vadd.f32 %v725, 1.0
    %v727 = vrcp.pop %v726
    %v728 = vmul.f32 %v726, %v727
    %v729 = vsub.f32 1.0, %v728
    %v730 = vmul.f32 %v727, %v729
    %v731 = vadd.f32 %v727, %v730
    %vm732 = vweird.f32 %v726
    %vm733 = vweird.f32 %v727
    %vm734 = vmor %vm732, %vm733
    %v735 = vsel %vm734, %v727, %v731
    %v736 = vand.u32 2147483647, %v726
    %vm737 = vcmp.eq.f32.partialorder %v736, 8.507059e+37
    %v738 = vand.u32 %v726, 2147483648
    %v739 = vor.u32 1.1754944e-38, %v738
    %v740 = vsel %vm737, %v739, %v735
    %v741 = vmul.f32 1.0, %v740
    %v742 = vadd.f32 %v680, %v706
    %v743 = vxor.u32 %v742, 2147483648
    %v744 = vmul.f32 %v743, 1.442695
    %v745 = vpow.pop %v744
    %v746 = vadd.f32 %v745, 1.0
    %v747 = vrcp.pop %v746
    %v748 = vmul.f32 %v746, %v747
    %v749 = vsub.f32 1.0, %v748
    %v750 = vmul.f32 %v747, %v749
    %v751 = vadd.f32 %v747, %v750
    %vm752 = vweird.f32 %v746
    %vm753 = vweird.f32 %v747
    %vm754 = vmor %vm752, %vm753
    %v755 = vsel %vm754, %v747, %v751
    %v756 = vand.u32 2147483647, %v746
    %vm757 = vcmp.eq.f32.partialorder %v756, 8.507059e+37
    %v758 = vand.u32 %v746, 2147483648
    %v759 = vor.u32 1.1754944e-38, %v758
    %v760 = vsel %vm757, %v759, %v755
    %v761 = vmul.f32 1.0, %v760
    %v762 = vadd.f32 %v719, %v478
    %v763 = vmul.f32 %v741, %v762
    %v764 = vadd.f32 %v681, %v763
    %v765 = vtanh.pop %v764
    %v766 = vsub.f32 1.0, %v761
    %v767 = vmul.f32 %v766, %v765
    %v768 = vmul.f32 %v761, %v675
    %v769 = vadd.f32 %v767, %v768
    %s770 = smul.u32 4, 3
    %s771 = smul.addr %s770, 8
    %s772 = scalar_lea.vmem [#allocation2], %s771
    %v773 = vld [vmem:[%s772] sm:$0xff]
    %v774 = vld [vmem:[%s772 + $0x8] sm:$0xff]
    %v775 = vld [vmem:[%s772 + $0x10] sm:$0xff]
    %v776 = vpack.c.bf16 %v769, %v769
    %777 = vmatpush.bf16.msra.mxu0 %v371
    %778 = vmatpush.bf16.msra.mxu0 %v368
    %779 = vmatpush.bf16.msra.mxu0 %v365
    %780 = vmatpush.bf16.msra.mxu0 %v362
    %781 = vmatpush.bf16.msra.mxu0 %v359
    %782 = vmatpush.bf16.msra.mxu0 %v356
    %783 = vmatpush.bf16.msra.mxu0 %v353
    %784 = vmatpush.bf16.msra.mxu0 %v350
    %785 = vmatmul.bf16.gmra.mxu0 %v776
    %v786 = vpop.f32.mrf.mxu0
    %v787 = vadd.f32 0.0, %v786
    %v788 = vpop.f32.mrf.mxu0
    %789 = vdwg.mxu0
    %790 = vmatpush.bf16.msra.mxu0 %v372
    %791 = vmatpush.bf16.msra.mxu0 %v369
    %792 = vmatpush.bf16.msra.mxu0 %v366
    %793 = vmatpush.bf16.msra.mxu0 %v363
    %794 = vmatpush.bf16.msra.mxu0 %v360
    %795 = vmatpush.bf16.msra.mxu0 %v357
    %796 = vmatpush.bf16.msra.mxu0 %v354
    %797 = vmatpush.bf16.msra.mxu0 %v351
    %798 = vmatmul.bf16.gmra.mxu0 %v776
    %v799 = vpop.f32.mrf.mxu0
    %v800 = vadd.f32 0.0, %v799
    %v801 = vpop.f32.mrf.mxu0
    %802 = vdwg.mxu0
    %803 = vmatpush.bf16.msra.mxu0 %v373
    %804 = vmatpush.bf16.msra.mxu0 %v370
    %805 = vmatpush.bf16.msra.mxu0 %v367
    %806 = vmatpush.bf16.msra.mxu0 %v364
    %807 = vmatpush.bf16.msra.mxu0 %v361
    %808 = vmatpush.bf16.msra.mxu0 %v358
    %809 = vmatpush.bf16.msra.mxu0 %v355
    %810 = vmatpush.bf16.msra.mxu0 %v352
    %811 = vmatmul.bf16.gmra.mxu0 %v776
    %v812 = vpop.f32.mrf.mxu0
    %v813 = vadd.f32 0.0, %v812
    %v814 = vpop.f32.mrf.mxu0
    %815 = vdwg.mxu0
    %v816 = vadd.f32 %v773, %v787
    %v817 = vxor.u32 %v816, 2147483648
    %v818 = vmul.f32 %v817, 1.442695
    %v819 = vpow.pop %v818
    %v820 = vadd.f32 %v819, 1.0
    %v821 = vrcp.pop %v820
    %v822 = vmul.f32 %v820, %v821
    %v823 = vsub.f32 1.0, %v822
    %v824 = vmul.f32 %v821, %v823
    %v825 = vadd.f32 %v821, %v824
    %vm826 = vweird.f32 %v820
    %vm827 = vweird.f32 %v821
    %vm828 = vmor %vm826, %vm827
    %v829 = vsel %vm828, %v821, %v825
    %v830 = vand.u32 2147483647, %v820
    %vm831 = vcmp.eq.f32.partialorder %v830, 8.507059e+37
    %v832 = vand.u32 %v820, 2147483648
    %v833 = vor.u32 1.1754944e-38, %v832
    %v834 = vsel %vm831, %v833, %v829
    %v835 = vmul.f32 1.0, %v834
    %v836 = vadd.f32 %v774, %v800
    %v837 = vxor.u32 %v836, 2147483648
    %v838 = vmul.f32 %v837, 1.442695
    %v839 = vpow.pop %v838
    %v840 = vadd.f32 %v839, 1.0
    %v841 = vrcp.pop %v840
    %v842 = vmul.f32 %v840, %v841
    %v843 = vsub.f32 1.0, %v842
    %v844 = vmul.f32 %v841, %v843
    %v845 = vadd.f32 %v841, %v844
    %vm846 = vweird.f32 %v840
    %vm847 = vweird.f32 %v841
    %vm848 = vmor %vm846, %vm847
    %v849 = vsel %vm848, %v841, %v845
    %v850 = vand.u32 2147483647, %v840
    %vm851 = vcmp.eq.f32.partialorder %v850, 8.507059e+37
    %v852 = vand.u32 %v840, 2147483648
    %v853 = vor.u32 1.1754944e-38, %v852
    %v854 = vsel %vm851, %v853, %v849
    %v855 = vmul.f32 1.0, %v854
    %v856 = vadd.f32 %v813, %v478
    %v857 = vmul.f32 %v835, %v856
    %v858 = vadd.f32 %v775, %v857
    %v859 = vtanh.pop %v858
    %v860 = vsub.f32 1.0, %v855
    %v861 = vmul.f32 %v860, %v859
    %v862 = vmul.f32 %v855, %v769
    %v863 = vadd.f32 %v861, %v862
    %s864 = smul.u32 5, 3
    %s865 = smul.addr %s864, 8
    %s866 = scalar_lea.vmem [#allocation2], %s865
    %v867 = vld [vmem:[%s866] sm:$0xff]
    %v868 = vld [vmem:[%s866 + $0x8] sm:$0xff]
    %v869 = vld [vmem:[%s866 + $0x10] sm:$0xff]
    %v870 = vpack.c.bf16 %v863, %v863
    %871 = vmatpush.bf16.msra.mxu0 %v371
    %872 = vmatpush.bf16.msra.mxu0 %v368
    %873 = vmatpush.bf16.msra.mxu0 %v365
    %874 = vmatpush.bf16.msra.mxu0 %v362
    %875 = vmatpush.bf16.msra.mxu0 %v359
    %876 = vmatpush.bf16.msra.mxu0 %v356
    %877 = vmatpush.bf16.msra.mxu0 %v353
    %878 = vmatpush.bf16.msra.mxu0 %v350
    %879 = vmatmul.bf16.gmra.mxu0 %v870
    %v880 = vpop.f32.mrf.mxu0
    %v881 = vadd.f32 0.0, %v880
    %v882 = vpop.f32.mrf.mxu0
    %883 = vdwg.mxu0
    %884 = vmatpush.bf16.msra.mxu0 %v372
    %885 = vmatpush.bf16.msra.mxu0 %v369
    %886 = vmatpush.bf16.msra.mxu0 %v366
    %887 = vmatpush.bf16.msra.mxu0 %v363
    %888 = vmatpush.bf16.msra.mxu0 %v360
    %889 = vmatpush.bf16.msra.mxu0 %v357
    %890 = vmatpush.bf16.msra.mxu0 %v354
    %891 = vmatpush.bf16.msra.mxu0 %v351
    %892 = vmatmul.bf16.gmra.mxu0 %v870
    %v893 = vpop.f32.mrf.mxu0
    %v894 = vadd.f32 0.0, %v893
    %v895 = vpop.f32.mrf.mxu0
    %896 = vdwg.mxu0
    %897 = vmatpush.bf16.msra.mxu0 %v373
    %898 = vmatpush.bf16.msra.mxu0 %v370
    %899 = vmatpush.bf16.msra.mxu0 %v367
    %900 = vmatpush.bf16.msra.mxu0 %v364
    %901 = vmatpush.bf16.msra.mxu0 %v361
    %902 = vmatpush.bf16.msra.mxu0 %v358
    %903 = vmatpush.bf16.msra.mxu0 %v355
    %904 = vmatpush.bf16.msra.mxu0 %v352
    %905 = vmatmul.bf16.gmra.mxu0 %v870
    %v906 = vpop.f32.mrf.mxu0
    %v907 = vadd.f32 0.0, %v906
    %v908 = vpop.f32.mrf.mxu0
    %909 = vdwg.mxu0
    %v910 = vadd.f32 %v867, %v881
    %v911 = vxor.u32 %v910, 2147483648
    %v912 = vmul.f32 %v911, 1.442695
    %v913 = vpow.pop %v912
    %v914 = vadd.f32 %v913, 1.0
    %v915 = vrcp.pop %v914
    %v916 = vmul.f32 %v914, %v915
    %v917 = vsub.f32 1.0, %v916
    %v918 = vmul.f32 %v915, %v917
    %v919 = vadd.f32 %v915, %v918
    %vm920 = vweird.f32 %v914
    %vm921 = vweird.f32 %v915
    %vm922 = vmor %vm920, %vm921
    %v923 = vsel %vm922, %v915, %v919
    %v924 = vand.u32 2147483647, %v914
    %vm925 = vcmp.eq.f32.partialorder %v924, 8.507059e+37
    %v926 = vand.u32 %v914, 2147483648
    %v927 = vor.u32 1.1754944e-38, %v926
    %v928 = vsel %vm925, %v927, %v923
    %v929 = vmul.f32 1.0, %v928
    %v930 = vadd.f32 %v868, %v894
    %v931 = vxor.u32 %v930, 2147483648
    %v932 = vmul.f32 %v931, 1.442695
    %v933 = vpow.pop %v932
    %v934 = vadd.f32 %v933, 1.0
    %v935 = vrcp.pop %v934
    %v936 = vmul.f32 %v934, %v935
    %v937 = vsub.f32 1.0, %v936
    %v938 = vmul.f32 %v935, %v937
    %v939 = vadd.f32 %v935, %v938
    %vm940 = vweird.f32 %v934
    %vm941 = vweird.f32 %v935
    %vm942 = vmor %vm940, %vm941
    %v943 = vsel %vm942, %v935, %v939
    %v944 = vand.u32 2147483647, %v934
    %vm945 = vcmp.eq.f32.partialorder %v944, 8.507059e+37
    %v946 = vand.u32 %v934, 2147483648
    %v947 = vor.u32 1.1754944e-38, %v946
    %v948 = vsel %vm945, %v947, %v943
    %v949 = vmul.f32 1.0, %v948
    %v950 = vadd.f32 %v907, %v478
    %v951 = vmul.f32 %v929, %v950
    %v952 = vadd.f32 %v869, %v951
    %v953 = vtanh.pop %v952
    %v954 = vsub.f32 1.0, %v949
    %v955 = vmul.f32 %v954, %v953
    %v956 = vmul.f32 %v949, %v863
    %v957 = vadd.f32 %v955, %v956
    %s958 = smul.u32 6, 3
    %s959 = smul.addr %s958, 8
    %s960 = scalar_lea.vmem [#allocation2], %s959
    %v961 = vld [vmem:[%s960] sm:$0xff]
    %v962 = vld [vmem:[%s960 + $0x8] sm:$0xff]
    %v963 = vld [vmem:[%s960 + $0x10] sm:$0xff]
    %v964 = vpack.c.bf16 %v957, %v957
    %965 = vmatpush.bf16.msra.mxu0 %v371
    %966 = vmatpush.bf16.msra.mxu0 %v368
    %967 = vmatpush.bf16.msra.mxu0 %v365
    %968 = vmatpush.bf16.msra.mxu0 %v362
    %969 = vmatpush.bf16.msra.mxu0 %v359
    %970 = vmatpush.bf16.msra.mxu0 %v356
    %971 = vmatpush.bf16.msra.mxu0 %v353
    %972 = vmatpush.bf16.msra.mxu0 %v350
    %973 = vmatmul.bf16.gmra.mxu0 %v964
    %v974 = vpop.f32.mrf.mxu0
    %v975 = vadd.f32 0.0, %v974
    %v976 = vpop.f32.mrf.mxu0
    %977 = vdwg.mxu0
    %978 = vmatpush.bf16.msra.mxu0 %v372
    %979 = vmatpush.bf16.msra.mxu0 %v369
    %980 = vmatpush.bf16.msra.mxu0 %v366
    %981 = vmatpush.bf16.msra.mxu0 %v363
    %982 = vmatpush.bf16.msra.mxu0 %v360
    %983 = vmatpush.bf16.msra.mxu0 %v357
    %984 = vmatpush.bf16.msra.mxu0 %v354
    %985 = vmatpush.bf16.msra.mxu0 %v351
    %986 = vmatmul.bf16.gmra.mxu0 %v964
    %v987 = vpop.f32.mrf.mxu0
    %v988 = vadd.f32 0.0, %v987
    %v989 = vpop.f32.mrf.mxu0
    %990 = vdwg.mxu0
    %991 = vmatpush.bf16.msra.mxu0 %v373
    %992 = vmatpush.bf16.msra.mxu0 %v370
    %993 = vmatpush.bf16.msra.mxu0 %v367
    %994 = vmatpush.bf16.msra.mxu0 %v364
    %995 = vmatpush.bf16.msra.mxu0 %v361
    %996 = vmatpush.bf16.msra.mxu0 %v358
    %997 = vmatpush.bf16.msra.mxu0 %v355
    %998 = vmatpush.bf16.msra.mxu0 %v352
    %999 = vmatmul.bf16.gmra.mxu0 %v964
    %v1000 = vpop.f32.mrf.mxu0
    %v1001 = vadd.f32 0.0, %v1000
    %v1002 = vpop.f32.mrf.mxu0
    %1003 = vdwg.mxu0
    %v1004 = vadd.f32 %v961, %v975
    %v1005 = vxor.u32 %v1004, 2147483648
    %v1006 = vmul.f32 %v1005, 1.442695
    %v1007 = vpow.pop %v1006
    %v1008 = vadd.f32 %v1007, 1.0
    %v1009 = vrcp.pop %v1008
    %v1010 = vmul.f32 %v1008, %v1009
    %v1011 = vsub.f32 1.0, %v1010
    %v1012 = vmul.f32 %v1009, %v1011
    %v1013 = vadd.f32 %v1009, %v1012
    %vm1014 = vweird.f32 %v1008
    %vm1015 = vweird.f32 %v1009
    %vm1016 = vmor %vm1014, %vm1015
    %v1017 = vsel %vm1016, %v1009, %v1013
    %v1018 = vand.u32 2147483647, %v1008
    %vm1019 = vcmp.eq.f32.partialorder %v1018, 8.507059e+37
    %v1020 = vand.u32 %v1008, 2147483648
    %v1021 = vor.u32 1.1754944e-38, %v1020
    %v1022 = vsel %vm1019, %v1021, %v1017
    %v1023 = vmul.f32 1.0, %v1022
    %v1024 = vadd.f32 %v962, %v988
    %v1025 = vxor.u32 %v1024, 2147483648
    %v1026 = vmul.f32 %v1025, 1.442695
    %v1027 = vpow.pop %v1026
    %v1028 = vadd.f32 %v1027, 1.0
    %v1029 = vrcp.pop %v1028
    %v1030 = vmul.f32 %v1028, %v1029
    %v1031 = vsub.f32 1.0, %v1030
    %v1032 = vmul.f32 %v1029, %v1031
    %v1033 = vadd.f32 %v1029, %v1032
    %vm1034 = vweird.f32 %v1028
    %vm1035 = vweird.f32 %v1029
    %vm1036 = vmor %vm1034, %vm1035
    %v1037 = vsel %vm1036, %v1029, %v1033
    %v1038 = vand.u32 2147483647, %v1028
    %vm1039 = vcmp.eq.f32.partialorder %v1038, 8.507059e+37
    %v1040 = vand.u32 %v1028, 2147483648
    %v1041 = vor.u32 1.1754944e-38, %v1040
    %v1042 = vsel %vm1039, %v1041, %v1037
    %v1043 = vmul.f32 1.0, %v1042
    %v1044 = vadd.f32 %v1001, %v478
    %v1045 = vmul.f32 %v1023, %v1044
    %v1046 = vadd.f32 %v963, %v1045
    %v1047 = vtanh.pop %v1046
    %v1048 = vsub.f32 1.0, %v1043
    %v1049 = vmul.f32 %v1048, %v1047
    %v1050 = vmul.f32 %v1043, %v957
    %v1051 = vadd.f32 %v1049, %v1050
    %s1052 = smul.u32 7, 3
    %s1053 = smul.addr %s1052, 8
    %s1054 = scalar_lea.vmem [#allocation2], %s1053
    %v1055 = vld [vmem:[%s1054] sm:$0xff]
    %v1056 = vld [vmem:[%s1054 + $0x8] sm:$0xff]
    %v1057 = vld [vmem:[%s1054 + $0x10] sm:$0xff]
    %v1058 = vpack.c.bf16 %v1051, %v1051
    %1059 = vmatpush.bf16.msra.mxu0 %v371
    %1060 = vmatpush.bf16.msra.mxu0 %v368
    %1061 = vmatpush.bf16.msra.mxu0 %v365
    %1062 = vmatpush.bf16.msra.mxu0 %v362
    %1063 = vmatpush.bf16.msra.mxu0 %v359
    %1064 = vmatpush.bf16.msra.mxu0 %v356
    %1065 = vmatpush.bf16.msra.mxu0 %v353
    %1066 = vmatpush.bf16.msra.mxu0 %v350
    %1067 = vmatmul.bf16.gmra.mxu0 %v1058
    %v1068 = vpop.f32.mrf.mxu0
    %v1069 = vadd.f32 0.0, %v1068
    %v1070 = vpop.f32.mrf.mxu0
    %1071 = vdwg.mxu0
    %1072 = vmatpush.bf16.msra.mxu0 %v372
    %1073 = vmatpush.bf16.msra.mxu0 %v369
    %1074 = vmatpush.bf16.msra.mxu0 %v366
    %1075 = vmatpush.bf16.msra.mxu0 %v363
    %1076 = vmatpush.bf16.msra.mxu0 %v360
    %1077 = vmatpush.bf16.msra.mxu0 %v357
    %1078 = vmatpush.bf16.msra.mxu0 %v354
    %1079 = vmatpush.bf16.msra.mxu0 %v351
    %1080 = vmatmul.bf16.gmra.mxu0 %v1058
    %v1081 = vpop.f32.mrf.mxu0
    %v1082 = vadd.f32 0.0, %v1081
    %v1083 = vpop.f32.mrf.mxu0
    %1084 = vdwg.mxu0
    %1085 = vmatpush.bf16.msra.mxu0 %v373
    %1086 = vmatpush.bf16.msra.mxu0 %v370
    %1087 = vmatpush.bf16.msra.mxu0 %v367
    %1088 = vmatpush.bf16.msra.mxu0 %v364
    %1089 = vmatpush.bf16.msra.mxu0 %v361
    %1090 = vmatpush.bf16.msra.mxu0 %v358
    %1091 = vmatpush.bf16.msra.mxu0 %v355
    %1092 = vmatpush.bf16.msra.mxu0 %v352
    %1093 = vmatmul.bf16.gmra.mxu0 %v1058
    %v1094 = vpop.f32.mrf.mxu0
    %v1095 = vadd.f32 0.0, %v1094
    %v1096 = vpop.f32.mrf.mxu0
    %1097 = vdwg.mxu0
    %v1098 = vadd.f32 %v1055, %v1069
    %v1099 = vxor.u32 %v1098, 2147483648
    %v1100 = vmul.f32 %v1099, 1.442695
    %v1101 = vpow.pop %v1100
    %v1102 = vadd.f32 %v1101, 1.0
    %v1103 = vrcp.pop %v1102
    %v1104 = vmul.f32 %v1102, %v1103
    %v1105 = vsub.f32 1.0, %v1104
    %v1106 = vmul.f32 %v1103, %v1105
    %v1107 = vadd.f32 %v1103, %v1106
    %vm1108 = vweird.f32 %v1102
    %vm1109 = vweird.f32 %v1103
    %vm1110 = vmor %vm1108, %vm1109
    %v1111 = vsel %vm1110, %v1103, %v1107
    %v1112 = vand.u32 2147483647, %v1102
    %vm1113 = vcmp.eq.f32.partialorder %v1112, 8.507059e+37
    %v1114 = vand.u32 %v1102, 2147483648
    %v1115 = vor.u32 1.1754944e-38, %v1114
    %v1116 = vsel %vm1113, %v1115, %v1111
    %v1117 = vmul.f32 1.0, %v1116
    %v1118 = vadd.f32 %v1056, %v1082
    %v1119 = vxor.u32 %v1118, 2147483648
    %v1120 = vmul.f32 %v1119, 1.442695
    %v1121 = vpow.pop %v1120
    %v1122 = vadd.f32 %v1121, 1.0
    %v1123 = vrcp.pop %v1122
    %v1124 = vmul.f32 %v1122, %v1123
    %v1125 = vsub.f32 1.0, %v1124
    %v1126 = vmul.f32 %v1123, %v1125
    %v1127 = vadd.f32 %v1123, %v1126
    %vm1128 = vweird.f32 %v1122
    %vm1129 = vweird.f32 %v1123
    %vm1130 = vmor %vm1128, %vm1129
    %v1131 = vsel %vm1130, %v1123, %v1127
    %v1132 = vand.u32 2147483647, %v1122
    %vm1133 = vcmp.eq.f32.partialorder %v1132, 8.507059e+37
    %v1134 = vand.u32 %v1122, 2147483648
    %v1135 = vor.u32 1.1754944e-38, %v1134
    %v1136 = vsel %vm1133, %v1135, %v1131
    %v1137 = vmul.f32 1.0, %v1136
    %v1138 = vadd.f32 %v1095, %v478
    %v1139 = vmul.f32 %v1117, %v1138
    %v1140 = vadd.f32 %v1057, %v1139
    %v1141 = vtanh.pop %v1140
    %v1142 = vsub.f32 1.0, %v1137
    %v1143 = vmul.f32 %v1142, %v1141
    %v1144 = vmul.f32 %v1137, %v1051
    %v1145 = vadd.f32 %v1143, %v1144
    %1146 = vst [vmem:[%s9] sm:$0xff] %v1145
    %v1147 = vmax.f32 %v1145, 0.0
    %v1148 = vpack.c.bf16 %v1147, %v1147
    %v1149 = vld [vmem:[%s6] sm:$0xff]
    %v1150 = vld [vmem:[%s6 + $0x8] sm:$0xff]
    %v1151 = vld [vmem:[%s6 + $0x10] sm:$0xff]
    %v1152 = vld [vmem:[%s6 + $0x18] sm:$0xff]
    %v1153 = vld [vmem:[%s6 + $0x20] sm:$0xff]
    %v1154 = vld [vmem:[%s6 + $0x28] sm:$0xff]
    %v1155 = vld [vmem:[%s6 + $0x30] sm:$0xff]
    %v1156 = vld [vmem:[%s6 + $0x38] sm:$0xff]
    %v1157 = vld [vmem:[%s6 + $0x40] sm:$0xff]
    %v1158 = vld [vmem:[%s6 + $0x48] sm:$0xff]
    %v1159 = vld [vmem:[%s6 + $0x50] sm:$0xff]
    %v1160 = vld [vmem:[%s6 + $0x58] sm:$0xff]
    %v1161 = vld [vmem:[%s6 + $0x60] sm:$0xff]
    %v1162 = vld [vmem:[%s6 + $0x68] sm:$0xff]
    %v1163 = vld [vmem:[%s6 + $0x70] sm:$0xff]
    %v1164 = vld [vmem:[%s6 + $0x78] sm:$0xff]
    %v1165 = vld [vmem:[%s7] sm:$0x3]
    %v1167 = vperm.slane %v1165, 0
    %v1168 = vperm.slane %v1165, 1
    %v1187 = vunpack.c.l.b16 %v1149
    %v1188 = vunpack.c.h.b16 %v1149
    %v1189 = vunpack.c.l.b16 %v1150
    %v1190 = vunpack.c.h.b16 %v1150
    %v1191 = vunpack.c.l.b16 %v1151
    %v1192 = vunpack.c.h.b16 %v1151
    %v1193 = vunpack.c.l.b16 %v1152
    %v1194 = vunpack.c.h.b16 %v1152
    %v1195 = vunpack.c.l.b16 %v1153
    %v1196 = vunpack.c.h.b16 %v1153
    %v1197 = vunpack.c.l.b16 %v1154
    %v1198 = vunpack.c.h.b16 %v1154
    %v1199 = vunpack.c.l.b16 %v1155
    %v1200 = vunpack.c.h.b16 %v1155
    %v1201 = vunpack.c.l.b16 %v1156
    %v1202 = vunpack.c.h.b16 %v1156
    %v1203 = vunpack.c.l.b16 %v1157
    %v1204 = vunpack.c.h.b16 %v1157
    %v1205 = vunpack.c.l.b16 %v1158
    %v1206 = vunpack.c.h.b16 %v1158
    %v1207 = vunpack.c.l.b16 %v1159
    %v1208 = vunpack.c.h.b16 %v1159
    %v1209 = vunpack.c.l.b16 %v1160
    %v1210 = vunpack.c.h.b16 %v1160
    %v1211 = vunpack.c.l.b16 %v1161
    %v1212 = vunpack.c.h.b16 %v1161
    %v1213 = vunpack.c.l.b16 %v1162
    %v1214 = vunpack.c.h.b16 %v1162
    %v1215 = vunpack.c.l.b16 %v1163
    %v1216 = vunpack.c.h.b16 %v1163
    %v1217 = vunpack.c.l.b16 %v1164
    %v1218 = vunpack.c.h.b16 %v1164
    %v1219 = vpack.c.b16 %v1189, %v1187
    %v1220 = vpack.c.b16 %v1190, %v1188
    %v1221 = vpack.c.b16 %v1193, %v1191
    %v1222 = vpack.c.b16 %v1194, %v1192
    %v1223 = vpack.c.b16 %v1197, %v1195
    %v1224 = vpack.c.b16 %v1198, %v1196
    %v1225 = vpack.c.b16 %v1201, %v1199
    %v1226 = vpack.c.b16 %v1202, %v1200
    %v1227 = vpack.c.b16 %v1205, %v1203
    %v1228 = vpack.c.b16 %v1206, %v1204
    %v1229 = vpack.c.b16 %v1209, %v1207
    %v1230 = vpack.c.b16 %v1210, %v1208
    %v1231 = vpack.c.b16 %v1213, %v1211
    %v1232 = vpack.c.b16 %v1214, %v1212
    %v1233 = vpack.c.b16 %v1217, %v1215
    %v1234 = vpack.c.b16 %v1218, %v1216
    %1251 = vmatpush.bf16.msra.mxu0 %v1233
    %1252 = vmatpush.bf16.msra.mxu0 %v1231
    %1253 = vmatpush.bf16.msra.mxu0 %v1229
    %1254 = vmatpush.bf16.msra.mxu0 %v1227
    %1255 = vmatpush.bf16.msra.mxu0 %v1225
    %1256 = vmatpush.bf16.msra.mxu0 %v1223
    %1257 = vmatpush.bf16.msra.mxu0 %v1221
    %1258 = vmatpush.bf16.msra.mxu0 %v1219
    %1259 = vmatmul.bf16.gmra.mxu0 %v1148
    %v1260 = vpop.f32.mrf.mxu0
    %v1261 = vadd.f32 %v1167, %v1260
    %v1262 = vpop.f32.mrf.mxu0
    %1263 = vdwg.mxu0
    %1264 = vmatpush.bf16.msra.mxu0 %v1234
    %1265 = vmatpush.bf16.msra.mxu0 %v1232
    %1266 = vmatpush.bf16.msra.mxu0 %v1230
    %1267 = vmatpush.bf16.msra.mxu0 %v1228
    %1268 = vmatpush.bf16.msra.mxu0 %v1226
    %1269 = vmatpush.bf16.msra.mxu0 %v1224
    %1270 = vmatpush.bf16.msra.mxu0 %v1222
    %1271 = vmatpush.bf16.msra.mxu0 %v1220
    %1272 = vmatmul.bf16.gmra.mxu0 %v1148
    %v1273 = vpop.f32.mrf.mxu0
    %v1274 = vadd.f32 %v1168, %v1273
    %v1275 = vpop.f32.mrf.mxu0
    %1276 = vdwg.mxu0
    %1277 = vst [vmem:[#allocation6] sm:$0xff] %v1261
    %1278 = vst [vmem:[#allocation6 + $0x8] sm:$0xff] %v1274
    // Predicated region
    $region38: #{grunet_forward.1} parent=1 // pred_check
      _
    $region39: #{grunet_forward.1} parent=1 // pred_check_branch
      %1280 = sbr.rel (0) target = $region41
    $region40: #{grunet_forward.1} parent=1 // pred_region
      %1282 = vsyncadd [#allocation5], 0
      %s1284 = sshll.u32 [#allocation6], 4
      %s1285 = int_to_ptr.vmem [resolvable:$true] %s1284
      %s1286 = sshll.u32 %s8, 4
      %s1287 = int_to_ptr.hbm [resolvable:$true] %s1286
      %1289 = dma.vmem_to_hbm [thread:$0]  %s1285, 256, %s1287, [#allocation5]
    $region41: #{grunet_forward.1} parent=1 // pred_fallthru
      _
    // Predicated region
    $region42: #{grunet_forward.1} parent=1 // pred_check
      _
    $region43: #{grunet_forward.1} parent=1 // pred_check_branch
      %1291 = sbr.rel (0) target = $region45
    $region44: #{grunet_forward.1} parent=1 // pred_region
      _
    $region45: #{grunet_forward.1} parent=1 // pred_fallthru
      _
    // Predicated region
    $region46: #{grunet_forward.1} parent=1 // pred_check
      _
    $region47: #{grunet_forward.1} parent=1 // pred_check_branch
      %1293 = sbr.rel (0) target = $region49
    $region48: #{grunet_forward.1} parent=1 // pred_region
      %1295 = dma.done [#allocation5], 256
    $region49: #{grunet_forward.1} parent=1 // pred_fallthru
      _
    // Predicated region
    $region50: #{grunet_forward.1} parent=1 // pred_check
      _
    $region51: #{grunet_forward.1} parent=1 // pred_check_branch
      %1297 = sbr.rel (0) target = $region53
    $region52: #{grunet_forward.1} parent=1 // pred_region
      _
    $region53: #{grunet_forward.1} parent=1 // pred_fallthru
      _
    %1298 = vsyncpa [#allocation4], 1
    %1299 = vsyncpa [#allocation5], 1

</llo_original>
